<compile_context>
chip_gen: v7x
topology: tpu7x:2x2x1
jax: 0.10.0
libtpu: 0.0.40
codegen_flags: <defaults>
</compile_context>

<pallas_src>
import functools

import jax
import jax.numpy as jnp
import numpy as np
from jax import lax
from jax.experimental import pallas as pl
from jax.experimental.pallas import tpu as pltpu

EPS = 1e-12       # torch.nn.functional.normalize default eps
NEG_BIG = -1e30   # finite "minus infinity" for suppressed / padded logits


def _round_up(v, m):
    return (v + m - 1) // m * m


def _vmem_budget_bytes():
    """Generation-aware VMEM budget (~48 MiB on v7x, ~96 MiB on v5e/v6e)."""
    try:
        cap = int(pltpu.get_tpu_info().vmem_capacity_bytes)
    except Exception:  # interpret mode / attribute mismatch — be conservative
        cap = 64 << 20
    return int(min(cap * 3 // 4, 100 << 20))


def _srl_kernel(x_ref, wT_ref, invwn_ref, bias_ref, o_ref, cand_ref, *,
                top_k, out_dim, tile_o, n_o):
    """grid = (m_tiles, o_tiles); o axis is the reduction-like ('arbitrary') axis."""
    tm = x_ref.shape[0]
    j = pl.program_id(1)

    # --- one fused MXU matmul per (m, o) tile --------------------------------
    raw = jnp.dot(x_ref[...], wT_ref[...],
                  preferred_element_type=jnp.float32)            # (tm, tile_o)
    # Stage raw directly in the resident output block (no separate scratch).
    o_ref[j] = raw

    # --- routing logits for this tile ----------------------------------------
    # top-k of normalize(x) @ normalize(W).T is invariant to the positive
    # per-row 1/||x|| scale, so logits = raw * (1/||w_col||) ranks identically.
    logits = raw * invwn_ref[j]                                  # (tm, tile_o)
    if n_o * tile_o > out_dim:                                   # padded columns
        col = j * tile_o + lax.broadcasted_iota(jnp.int32, (tm, tile_o), 1)
        logits = jnp.where(col >= out_dim, NEG_BIG, logits)

    # --- per-tile top-k candidate extraction (runs alongside the j loop) -----
    kc = min(top_k, tile_o)
    tk_w = cand_ref.shape[-1]
    lane = lax.broadcasted_iota(jnp.int32, (tm, tk_w), 1)
    cand = jnp.full((tm, tk_w), NEG_BIG, dtype=jnp.float32)
    cur = logits
    for t in range(kc):
        m = jnp.max(cur, axis=-1, keepdims=True)                 # lane reduce
        cand = jnp.where(lane == t, m, cand)
        if t < kc - 1:
            cur = jnp.where(cur >= m, NEG_BIG, cur)
    cand_ref[j] = cand

    # --- finalize on the last out-tile ----------------------------------------
    @pl.when(j == n_o - 1)
    def _finalize():
        # k-th largest per row over the union of per-tile candidates only.
        c = cand_ref[...]                                        # (n_o, tm, tk_w)
        for _ in range(top_k - 1):
            m = jnp.max(jnp.max(c, axis=-1, keepdims=True), axis=0, keepdims=True)
            c = jnp.where(c >= m, NEG_BIG, c)
        thresh = jnp.max(jnp.max(c, axis=-1, keepdims=True),
                         axis=0, keepdims=True)[0]               # (tm, 1)

        # Mask + bias, one (tm, tile_o) chunk live at a time (bounded temps).
        for jo in range(n_o):                                    # static chunks
            raw_c = o_ref[jo]                                    # staged matmul result
            lg = raw_c * invwn_ref[jo]
            if (jo + 1) * tile_o > out_dim:                      # padded columns
                colc = jo * tile_o + lax.broadcasted_iota(
                    jnp.int32, (tm, tile_o), 1)
                lg = jnp.where(colc >= out_dim, NEG_BIG, lg)
            o_ref[jo] = jnp.where(lg >= thresh, raw_c + bias_ref[jo], 0.0)


def safe_routing_linear(x, weight, bias=None, top_k=32,
                        tile_m=256, tile_o=None, matmul_dtype=None):
    """x: (..., in_dim); weight: (out_dim, in_dim); bias: (out_dim,) or None."""
    out_dim, in_dim = weight.shape
    assert 1 <= top_k <= out_dim
    lead_shape = x.shape[:-1]
    x_flat = x.reshape(-1, in_dim).astype(jnp.float32)
    n = x_flat.shape[0]

    budget = _vmem_budget_bytes()
    dsz = 2 if matmul_dtype == jnp.bfloat16 else 4

    # ---- row-tile size -------------------------------------------------------
    tm = min(_round_up(max(tile_m, 8), 8), _round_up(max(n, 1), 8))
    out_p1 = _round_up(out_dim, 128)

    def est_single(tm_):
        # x(x2 bufs) + wT(x2 bufs) + scales/bias + out(x2 bufs) + in-kernel temps
        return (2 * tm_ * in_dim * dsz + 2 * in_dim * out_p1 * dsz
                + 4 * out_p1 * 4 + 2 * tm_ * out_p1 * 4
                + 4 * tm_ * out_p1 * 4 + tm_ * 128 * 4)

    while tm > 128 and est_single(tm) > budget:
        tm = max(128, tm // 2)

    # ---- out-dim tiling: prefer n_o == 1 (weight DMA'd once) when it fits ----
    if tile_o is None:
        if est_single(tm) <= budget:
            tile_o = out_p1
        else:
            tile_o = 256 if out_p1 >= 256 else 128
            for cand_to in (4096, 2048, 1024, 512, 256):   # 256-aligned (MXU width)
                if cand_to > out_p1:
                    continue
                out_pc = _round_up(out_dim, cand_to)
                n_oc = out_pc // cand_to
                tkw_c = _round_up(min(top_k, cand_to), 128)
                est_t = (2 * tm * in_dim * dsz + 2 * in_dim * cand_to * dsz
                         + 4 * out_pc * 4 + 2 * tm * out_pc * 4
                         + n_oc * tm * tkw_c * 4 + 4 * tm * cand_to * 4)
                if est_t <= budget:
                    tile_o = cand_to
                    break
    tile_o = max(128, _round_up(min(tile_o, out_p1), 128))
    out_p = _round_up(out_dim, tile_o)
    n_o = out_p // tile_o
    tk_w = _round_up(min(top_k, tile_o), 128)

    # ---- host-side prep -------------------------------------------------------
    w = weight.astype(jnp.float32)                                      # (O, D)
    inv_wn = lax.rsqrt(jnp.maximum(jnp.sum(w * w, axis=1), EPS * EPS))  # (O,)
    pad_o = out_p - out_dim
    wT_p = jnp.pad(w.T, ((0, 0), (0, pad_o)))                           # (D, out_p)
    invwn3 = jnp.pad(inv_wn, (0, pad_o)).reshape(n_o, 1, tile_o)
    if bias is None:
        bias3 = jnp.zeros((n_o, 1, tile_o), jnp.float32)
    else:
        bias3 = jnp.pad(bias.astype(jnp.float32), (0, pad_o)).reshape(n_o, 1, tile_o)

    n_p = _round_up(max(n, 1), tm)
    nm = n_p // tm
    # Padded (all-zero) rows produce all-zero logits; they are sliced off below.
    x_p = jnp.pad(x_flat, ((0, n_p - n), (0, 0)))

    if matmul_dtype is not None:
        x_p = x_p.astype(matmul_dtype)
        wT_p = wT_p.astype(matmul_dtype)

    kernel = functools.partial(_srl_kernel, top_k=top_k, out_dim=out_dim,
                               tile_o=tile_o, n_o=n_o)

    est = (2 * tm * in_dim * dsz + 2 * in_dim * tile_o * dsz + 4 * out_p * 4
           + 2 * tm * out_p * 4 + n_o * tm * tk_w * 4 + 4 * tm * tile_o * 4)
    vmem_limit = int(min(max(est * 5 // 4 + (4 << 20), 32 << 20), budget))

    out3 = pl.pallas_call(
        kernel,
        out_shape=jax.ShapeDtypeStruct((n_o, n_p, tile_o), jnp.float32),
        grid_spec=pltpu.PrefetchScalarGridSpec(
            num_scalar_prefetch=0,
            grid=(nm, n_o),
            in_specs=[
                pl.BlockSpec((tm, in_dim), lambda i, j: (i, 0)),
                pl.BlockSpec((in_dim, tile_o), lambda i, j: (0, j)),
                pl.BlockSpec((n_o, 1, tile_o), lambda i, j: (0, 0, 0)),
                pl.BlockSpec((n_o, 1, tile_o), lambda i, j: (0, 0, 0)),
            ],
            out_specs=pl.BlockSpec((n_o, tm, tile_o), lambda i, j: (0, i, 0)),
            scratch_shapes=[pltpu.VMEM((n_o, tm, tk_w), jnp.float32)],
        ),
        compiler_params=pltpu.CompilerParams(
            dimension_semantics=("parallel", "arbitrary"),
            vmem_limit_bytes=vmem_limit,
        ),
    )(x_p, wT_p, invwn3, bias3)

    # (n_o, n_p, tile_o) -> (n_p, out_p); trivial when n_o == 1.
    out2d = jnp.transpose(out3, (1, 0, 2)).reshape(n_p, out_p)
    return out2d[:n, :out_dim].reshape(*lead_shape, out_dim)


def safe_routing_linear_ref(x, weight, bias, top_k):
    """Pure-JAX reference mirroring the PyTorch loop semantics."""
    out_dim, in_dim = weight.shape
    lead_shape = x.shape[:-1]
    x_flat = x.reshape(-1, in_dim)
    x_n = x_flat / jnp.maximum(
        jnp.sqrt(jnp.sum(x_flat * x_flat, axis=1, keepdims=True)), EPS)
    w_n = weight / jnp.maximum(
        jnp.sqrt(jnp.sum(weight * weight, axis=1, keepdims=True)), EPS)
    logits = x_n @ w_n.T
    _, ids = lax.top_k(logits, top_k)                 # (N, top_k)
    w_topk = weight[ids]                              # (N, top_k, in_dim)
    local = jnp.einsum("nkd,nd->nk", w_topk, x_flat)
    if bias is not None:
        local = local + bias[ids]
    full = jnp.zeros((x_flat.shape[0], out_dim), jnp.float32)
    row_idx = jnp.arange(x_flat.shape[0])[:, None]
    full = full.at[row_idx, ids].set(local)
    return full.reshape(*lead_shape, out_dim)


if __name__ == "__main__":
    key = jax.random.PRNGKey(0)
    k_x, k_w, k_b, k_x2, k_w2, k_b2, k_x3 = jax.random.split(key, 7)

    # Test 1: module-example shapes; single out-tile path (n_o == 1).
    batch, seq, in_dim, out_dim, top_k = 2, 8, 64, 128, 32
    x = jax.random.normal(k_x, (batch, seq, in_dim), dtype=jnp.float32)
    weight = jax.random.normal(k_w, (out_dim, in_dim), dtype=jnp.float32) * 0.1
    bias = jax.random.normal(k_b, (out_dim,), dtype=jnp.float32) * 0.1

    out = jax.block_until_ready(
        safe_routing_linear(x, weight, bias, top_k=top_k))
    ref = safe_routing_linear_ref(x, weight, bias, top_k)
    np.testing.assert_allclose(np.asarray(out), np.asarray(ref),
                               rtol=1e-5, atol=1e-5)

    # Test 2: row padding, out_dim padding to 256 and forced out tiling (n_o=2),
    # exercising the candidate buffer + chunked finalize.
    in_dim2, out_dim2, top_k2 = 96, 200, 16
    x2 = jax.random.normal(k_x2, (3, 5, in_dim2), dtype=jnp.float32)
    weight2 = jax.random.normal(k_w2, (out_dim2, in_dim2), dtype=jnp.float32) * 0.1
    bias2 = jax.random.normal(k_b2, (out_dim2,), dtype=jnp.float32) * 0.1

    out2 = jax.block_until_ready(
        safe_routing_linear(x2, weight2, bias2, top_k=top_k2, tile_o=128))
    ref2 = safe_routing_linear_ref(x2, weight2, bias2, top_k2)
    np.testing.assert_allclose(np.asarray(out2), np.asarray(ref2),
                               rtol=1e-5, atol=1e-5)

    # Test 3: no bias, top_k=1, multiple row tiles (nm > 1) with row padding.
    x3 = jax.random.normal(k_x3, (4, 7, in_dim), dtype=jnp.float32)
    out3 = jax.block_until_ready(
        safe_routing_linear(x3, weight, None, top_k=1, tile_m=8))
    ref3 = safe_routing_linear_ref(x3, weight, None, 1)
    np.testing.assert_allclose(np.asarray(out3), np.asarray(ref3),
                               rtol=1e-5, atol=1e-5)

    print("KERNEL_OK")
</pallas_src>

<mosaic_0001>
module attributes {stable_mosaic.version = 11 : i64} {
  func.func @_srl_kernel(%arg0: i32, %arg1: i32, %arg2: memref<16x64xf32, #tpu.memory_space<vmem>>, %arg3: memref<64x128xf32, #tpu.memory_space<vmem>>, %arg4: memref<1x1x128xf32, #tpu.memory_space<vmem>>, %arg5: memref<1x1x128xf32, #tpu.memory_space<vmem>>, %arg6: memref<1x16x128xf32, #tpu.memory_space<vmem>>, %arg7: memref<1x16x128xf32, #tpu.memory_space<vmem>>) attributes {dimension_semantics = [#tpu.dimension_semantics<parallel>, #tpu.dimension_semantics<arbitrary>], iteration_bounds = array<i64: 1, 1>, scalar_prefetch = 0 : i64, scratch_operands = 1 : i64, tpu.core_type = #tpu.core_type<tc>, window_params = [{transform_indices = @transform_0, window_bounds = array<i64: 16, 64>}, {transform_indices = @transform_1, window_bounds = array<i64: 64, 128>}, {pipeline_mode = #tpu.pipeline_mode<synchronous>, transform_indices = @transform_2, window_bounds = array<i64: 1, 1, 128>}, {pipeline_mode = #tpu.pipeline_mode<synchronous>, transform_indices = @transform_3, window_bounds = array<i64: 1, 1, 128>}, {transform_indices = @transform_4, window_bounds = array<i64: 1, 16, 128>}]} {
    %c0 = arith.constant 0 : index
    %c0_0 = arith.constant 0 : index
    %0 = vector.load %arg2[%c0, %c0_0] : memref<16x64xf32, #tpu.memory_space<vmem>>, vector<16x64xf32>
    %c0_1 = arith.constant 0 : index
    %c0_2 = arith.constant 0 : index
    %1 = vector.load %arg3[%c0_1, %c0_2] : memref<64x128xf32, #tpu.memory_space<vmem>>, vector<64x128xf32>
    %cst = arith.constant dense<0.000000e+00> : vector<16x128xf32>
    %2 = tpu.matmul %0, %1, %cst {dimension_numbers = #tpu.dot_dimension_numbers<[1], [0], [0], [1], [0, 0, 1, 1], [], []>} : vector<16x64xf32>, vector<64x128xf32>, vector<16x128xf32> -> vector<16x128xf32>
    %3 = arith.index_cast %arg1 : i32 to index
    %c0_3 = arith.constant 0 : index
    %c0_4 = arith.constant 0 : index
    %4 = vector.load %arg6[%3, %c0_3, %c0_4] : memref<1x16x128xf32, #tpu.memory_space<vmem>>, vector<1x16x128xf32>
    %5 = vector.shape_cast %4 : vector<1x16x128xf32> to vector<16x128xf32>
    %6 = vector.shape_cast %2 : vector<16x128xf32> to vector<1x16x128xf32>
    tpu.vector_store %arg6[%3, %c0_3, %c0_4], %6 {strides = array<i32>} : memref<1x16x128xf32, #tpu.memory_space<vmem>>, vector<1x16x128xf32>,
    %7 = arith.index_cast %arg1 : i32 to index
    %c0_5 = arith.constant 0 : index
    %c0_6 = arith.constant 0 : index
    %8 = vector.load %arg4[%7, %c0_5, %c0_6] : memref<1x1x128xf32, #tpu.memory_space<vmem>>, vector<1x1x128xf32>
    %9 = vector.shape_cast %8 : vector<1x1x128xf32> to vector<1x128xf32>
    %10 = vector.broadcast %9 : vector<1x128xf32> to vector<16x128xf32>
    %11 = arith.mulf %2, %10 : vector<16x128xf32>
    %12 = tpu.iota {dimensions = array<i32: 1>} : vector<16x128xi32>
    %cst_7 = arith.constant -1.000000e+30 : f32
    %13 = vector.broadcast %cst_7 : f32 to vector<16x128xf32>
    %cst_8 = arith.constant dense<0xFF800000> : vector<16xf32>
    %14 = vector.multi_reduction <maximumf>, %11, %cst_8 [1] : vector<16x128xf32> to vector<16xf32>
    %15 = vector.shape_cast %14 : vector<16xf32> to vector<16x1xf32>
    %c0_i32 = arith.constant 0 : i32
    %16 = vector.broadcast %c0_i32 : i32 to vector<16x128xi32>
    %17 = arith.cmpi eq, %12, %16 : vector<16x128xi32>
    %18 = vector.shape_cast %15 : vector<16x1xf32> to vector<16x1xf32>
    %19 = vector.broadcast %18 : vector<16x1xf32> to vector<16x128xf32>
    %20 = arith.select %17, %19, %13 : vector<16x128xi1>, vector<16x128xf32>
    %21 = vector.broadcast %15 : vector<16x1xf32> to vector<16x128xf32>
    %22 = arith.cmpf oge, %11, %21 : vector<16x128xf32>
    %cst_9 = arith.constant -1.000000e+30 : f32
    %23 = vector.broadcast %cst_9 : f32 to vector<16x128xf32>
    %24 = arith.select %22, %23, %11 : vector<16x128xi1>, vector<16x128xf32>
    %cst_10 = arith.constant dense<0xFF800000> : vector<16xf32>
    %25 = vector.multi_reduction <maximumf>, %24, %cst_10 [1] : vector<16x128xf32> to vector<16xf32>
    %26 = vector.shape_cast %25 : vector<16xf32> to vector<16x1xf32>
    %c1_i32 = arith.constant 1 : i32
    %27 = vector.broadcast %c1_i32 : i32 to vector<16x128xi32>
    %28 = arith.cmpi eq, %12, %27 : vector<16x128xi32>
    %29 = vector.shape_cast %26 : vector<16x1xf32> to vector<16x1xf32>
    %30 = vector.broadcast %29 : vector<16x1xf32> to vector<16x128xf32>
    %31 = arith.select %28, %30, %20 : vector<16x128xi1>, vector<16x128xf32>
    %32 = vector.broadcast %26 : vector<16x1xf32> to vector<16x128xf32>
    %33 = arith.cmpf oge, %24, %32 : vector<16x128xf32>
    %cst_11 = arith.constant -1.000000e+30 : f32
    %34 = vector.broadcast %cst_11 : f32 to vector<16x128xf32>
    %35 = arith.select %33, %34, %24 : vector<16x128xi1>, vector<16x128xf32>
    %cst_12 = arith.constant dense<0xFF800000> : vector<16xf32>
    %36 = vector.multi_reduction <maximumf>, %35, %cst_12 [1] : vector<16x128xf32> to vector<16xf32>
    %37 = vector.shape_cast %36 : vector<16xf32> to vector<16x1xf32>
    %c2_i32 = arith.constant 2 : i32
    %38 = vector.broadcast %c2_i32 : i32 to vector<16x128xi32>
    %39 = arith.cmpi eq, %12, %38 : vector<16x128xi32>
    %40 = vector.shape_cast %37 : vector<16x1xf32> to vector<16x1xf32>
    %41 = vector.broadcast %40 : vector<16x1xf32> to vector<16x128xf32>
    %42 = arith.select %39, %41, %31 : vector<16x128xi1>, vector<16x128xf32>
    %43 = vector.broadcast %37 : vector<16x1xf32> to vector<16x128xf32>
    %44 = arith.cmpf oge, %35, %43 : vector<16x128xf32>
    %cst_13 = arith.constant -1.000000e+30 : f32
    %45 = vector.broadcast %cst_13 : f32 to vector<16x128xf32>
    %46 = arith.select %44, %45, %35 : vector<16x128xi1>, vector<16x128xf32>
    %cst_14 = arith.constant dense<0xFF800000> : vector<16xf32>
    %47 = vector.multi_reduction <maximumf>, %46, %cst_14 [1] : vector<16x128xf32> to vector<16xf32>
    %48 = vector.shape_cast %47 : vector<16xf32> to vector<16x1xf32>
    %c3_i32 = arith.constant 3 : i32
    %49 = vector.broadcast %c3_i32 : i32 to vector<16x128xi32>
    %50 = arith.cmpi eq, %12, %49 : vector<16x128xi32>
    %51 = vector.shape_cast %48 : vector<16x1xf32> to vector<16x1xf32>
    %52 = vector.broadcast %51 : vector<16x1xf32> to vector<16x128xf32>
    %53 = arith.select %50, %52, %42 : vector<16x128xi1>, vector<16x128xf32>
    %54 = vector.broadcast %48 : vector<16x1xf32> to vector<16x128xf32>
    %55 = arith.cmpf oge, %46, %54 : vector<16x128xf32>
    %cst_15 = arith.constant -1.000000e+30 : f32
    %56 = vector.broadcast %cst_15 : f32 to vector<16x128xf32>
    %57 = arith.select %55, %56, %46 : vector<16x128xi1>, vector<16x128xf32>
    %cst_16 = arith.constant dense<0xFF800000> : vector<16xf32>
    %58 = vector.multi_reduction <maximumf>, %57, %cst_16 [1] : vector<16x128xf32> to vector<16xf32>
    %59 = vector.shape_cast %58 : vector<16xf32> to vector<16x1xf32>
    %c4_i32 = arith.constant 4 : i32
    %60 = vector.broadcast %c4_i32 : i32 to vector<16x128xi32>
    %61 = arith.cmpi eq, %12, %60 : vector<16x128xi32>
    %62 = vector.shape_cast %59 : vector<16x1xf32> to vector<16x1xf32>
    %63 = vector.broadcast %62 : vector<16x1xf32> to vector<16x128xf32>
    %64 = arith.select %61, %63, %53 : vector<16x128xi1>, vector<16x128xf32>
    %65 = vector.broadcast %59 : vector<16x1xf32> to vector<16x128xf32>
    %66 = arith.cmpf oge, %57, %65 : vector<16x128xf32>
    %cst_17 = arith.constant -1.000000e+30 : f32
    %67 = vector.broadcast %cst_17 : f32 to vector<16x128xf32>
    %68 = arith.select %66, %67, %57 : vector<16x128xi1>, vector<16x128xf32>
    %cst_18 = arith.constant dense<0xFF800000> : vector<16xf32>
    %69 = vector.multi_reduction <maximumf>, %68, %cst_18 [1] : vector<16x128xf32> to vector<16xf32>
    %70 = vector.shape_cast %69 : vector<16xf32> to vector<16x1xf32>
    %c5_i32 = arith.constant 5 : i32
    %71 = vector.broadcast %c5_i32 : i32 to vector<16x128xi32>
    %72 = arith.cmpi eq, %12, %71 : vector<16x128xi32>
    %73 = vector.shape_cast %70 : vector<16x1xf32> to vector<16x1xf32>
    %74 = vector.broadcast %73 : vector<16x1xf32> to vector<16x128xf32>
    %75 = arith.select %72, %74, %64 : vector<16x128xi1>, vector<16x128xf32>
    %76 = vector.broadcast %70 : vector<16x1xf32> to vector<16x128xf32>
    %77 = arith.cmpf oge, %68, %76 : vector<16x128xf32>
    %cst_19 = arith.constant -1.000000e+30 : f32
    %78 = vector.broadcast %cst_19 : f32 to vector<16x128xf32>
    %79 = arith.select %77, %78, %68 : vector<16x128xi1>, vector<16x128xf32>
    %cst_20 = arith.constant dense<0xFF800000> : vector<16xf32>
    %80 = vector.multi_reduction <maximumf>, %79, %cst_20 [1] : vector<16x128xf32> to vector<16xf32>
    %81 = vector.shape_cast %80 : vector<16xf32> to vector<16x1xf32>
    %c6_i32 = arith.constant 6 : i32
    %82 = vector.broadcast %c6_i32 : i32 to vector<16x128xi32>
    %83 = arith.cmpi eq, %12, %82 : vector<16x128xi32>
    %84 = vector.shape_cast %81 : vector<16x1xf32> to vector<16x1xf32>
    %85 = vector.broadcast %84 : vector<16x1xf32> to vector<16x128xf32>
    %86 = arith.select %83, %85, %75 : vector<16x128xi1>, vector<16x128xf32>
    %87 = vector.broadcast %81 : vector<16x1xf32> to vector<16x128xf32>
    %88 = arith.cmpf oge, %79, %87 : vector<16x128xf32>
    %cst_21 = arith.constant -1.000000e+30 : f32
    %89 = vector.broadcast %cst_21 : f32 to vector<16x128xf32>
    %90 = arith.select %88, %89, %79 : vector<16x128xi1>, vector<16x128xf32>
    %cst_22 = arith.constant dense<0xFF800000> : vector<16xf32>
    %91 = vector.multi_reduction <maximumf>, %90, %cst_22 [1] : vector<16x128xf32> to vector<16xf32>
    %92 = vector.shape_cast %91 : vector<16xf32> to vector<16x1xf32>
    %c7_i32 = arith.constant 7 : i32
    %93 = vector.broadcast %c7_i32 : i32 to vector<16x128xi32>
    %94 = arith.cmpi eq, %12, %93 : vector<16x128xi32>
    %95 = vector.shape_cast %92 : vector<16x1xf32> to vector<16x1xf32>
    %96 = vector.broadcast %95 : vector<16x1xf32> to vector<16x128xf32>
    %97 = arith.select %94, %96, %86 : vector<16x128xi1>, vector<16x128xf32>
    %98 = vector.broadcast %92 : vector<16x1xf32> to vector<16x128xf32>
    %99 = arith.cmpf oge, %90, %98 : vector<16x128xf32>
    %cst_23 = arith.constant -1.000000e+30 : f32
    %100 = vector.broadcast %cst_23 : f32 to vector<16x128xf32>
    %101 = arith.select %99, %100, %90 : vector<16x128xi1>, vector<16x128xf32>
    %cst_24 = arith.constant dense<0xFF800000> : vector<16xf32>
    %102 = vector.multi_reduction <maximumf>, %101, %cst_24 [1] : vector<16x128xf32> to vector<16xf32>
    %103 = vector.shape_cast %102 : vector<16xf32> to vector<16x1xf32>
    %c8_i32 = arith.constant 8 : i32
    %104 = vector.broadcast %c8_i32 : i32 to vector<16x128xi32>
    %105 = arith.cmpi eq, %12, %104 : vector<16x128xi32>
    %106 = vector.shape_cast %103 : vector<16x1xf32> to vector<16x1xf32>
    %107 = vector.broadcast %106 : vector<16x1xf32> to vector<16x128xf32>
    %108 = arith.select %105, %107, %97 : vector<16x128xi1>, vector<16x128xf32>
    %109 = vector.broadcast %103 : vector<16x1xf32> to vector<16x128xf32>
    %110 = arith.cmpf oge, %101, %109 : vector<16x128xf32>
    %cst_25 = arith.constant -1.000000e+30 : f32
    %111 = vector.broadcast %cst_25 : f32 to vector<16x128xf32>
    %112 = arith.select %110, %111, %101 : vector<16x128xi1>, vector<16x128xf32>
    %cst_26 = arith.constant dense<0xFF800000> : vector<16xf32>
    %113 = vector.multi_reduction <maximumf>, %112, %cst_26 [1] : vector<16x128xf32> to vector<16xf32>
    %114 = vector.shape_cast %113 : vector<16xf32> to vector<16x1xf32>
    %c9_i32 = arith.constant 9 : i32
    %115 = vector.broadcast %c9_i32 : i32 to vector<16x128xi32>
    %116 = arith.cmpi eq, %12, %115 : vector<16x128xi32>
    %117 = vector.shape_cast %114 : vector<16x1xf32> to vector<16x1xf32>
    %118 = vector.broadcast %117 : vector<16x1xf32> to vector<16x128xf32>
    %119 = arith.select %116, %118, %108 : vector<16x128xi1>, vector<16x128xf32>
    %120 = vector.broadcast %114 : vector<16x1xf32> to vector<16x128xf32>
    %121 = arith.cmpf oge, %112, %120 : vector<16x128xf32>
    %cst_27 = arith.constant -1.000000e+30 : f32
    %122 = vector.broadcast %cst_27 : f32 to vector<16x128xf32>
    %123 = arith.select %121, %122, %112 : vector<16x128xi1>, vector<16x128xf32>
    %cst_28 = arith.constant dense<0xFF800000> : vector<16xf32>
    %124 = vector.multi_reduction <maximumf>, %123, %cst_28 [1] : vector<16x128xf32> to vector<16xf32>
    %125 = vector.shape_cast %124 : vector<16xf32> to vector<16x1xf32>
    %c10_i32 = arith.constant 10 : i32
    %126 = vector.broadcast %c10_i32 : i32 to vector<16x128xi32>
    %127 = arith.cmpi eq, %12, %126 : vector<16x128xi32>
    %128 = vector.shape_cast %125 : vector<16x1xf32> to vector<16x1xf32>
    %129 = vector.broadcast %128 : vector<16x1xf32> to vector<16x128xf32>
    %130 = arith.select %127, %129, %119 : vector<16x128xi1>, vector<16x128xf32>
    %131 = vector.broadcast %125 : vector<16x1xf32> to vector<16x128xf32>
    %132 = arith.cmpf oge, %123, %131 : vector<16x128xf32>
    %cst_29 = arith.constant -1.000000e+30 : f32
    %133 = vector.broadcast %cst_29 : f32 to vector<16x128xf32>
    %134 = arith.select %132, %133, %123 : vector<16x128xi1>, vector<16x128xf32>
    %cst_30 = arith.constant dense<0xFF800000> : vector<16xf32>
    %135 = vector.multi_reduction <maximumf>, %134, %cst_30 [1] : vector<16x128xf32> to vector<16xf32>
    %136 = vector.shape_cast %135 : vector<16xf32> to vector<16x1xf32>
    %c11_i32 = arith.constant 11 : i32
    %137 = vector.broadcast %c11_i32 : i32 to vector<16x128xi32>
    %138 = arith.cmpi eq, %12, %137 : vector<16x128xi32>
    %139 = vector.shape_cast %136 : vector<16x1xf32> to vector<16x1xf32>
    %140 = vector.broadcast %139 : vector<16x1xf32> to vector<16x128xf32>
    %141 = arith.select %138, %140, %130 : vector<16x128xi1>, vector<16x128xf32>
    %142 = vector.broadcast %136 : vector<16x1xf32> to vector<16x128xf32>
    %143 = arith.cmpf oge, %134, %142 : vector<16x128xf32>
    %cst_31 = arith.constant -1.000000e+30 : f32
    %144 = vector.broadcast %cst_31 : f32 to vector<16x128xf32>
    %145 = arith.select %143, %144, %134 : vector<16x128xi1>, vector<16x128xf32>
    %cst_32 = arith.constant dense<0xFF800000> : vector<16xf32>
    %146 = vector.multi_reduction <maximumf>, %145, %cst_32 [1] : vector<16x128xf32> to vector<16xf32>
    %147 = vector.shape_cast %146 : vector<16xf32> to vector<16x1xf32>
    %c12_i32 = arith.constant 12 : i32
    %148 = vector.broadcast %c12_i32 : i32 to vector<16x128xi32>
    %149 = arith.cmpi eq, %12, %148 : vector<16x128xi32>
    %150 = vector.shape_cast %147 : vector<16x1xf32> to vector<16x1xf32>
    %151 = vector.broadcast %150 : vector<16x1xf32> to vector<16x128xf32>
    %152 = arith.select %149, %151, %141 : vector<16x128xi1>, vector<16x128xf32>
    %153 = vector.broadcast %147 : vector<16x1xf32> to vector<16x128xf32>
    %154 = arith.cmpf oge, %145, %153 : vector<16x128xf32>
    %cst_33 = arith.constant -1.000000e+30 : f32
    %155 = vector.broadcast %cst_33 : f32 to vector<16x128xf32>
    %156 = arith.select %154, %155, %145 : vector<16x128xi1>, vector<16x128xf32>
    %cst_34 = arith.constant dense<0xFF800000> : vector<16xf32>
    %157 = vector.multi_reduction <maximumf>, %156, %cst_34 [1] : vector<16x128xf32> to vector<16xf32>
    %158 = vector.shape_cast %157 : vector<16xf32> to vector<16x1xf32>
    %c13_i32 = arith.constant 13 : i32
    %159 = vector.broadcast %c13_i32 : i32 to vector<16x128xi32>
    %160 = arith.cmpi eq, %12, %159 : vector<16x128xi32>
    %161 = vector.shape_cast %158 : vector<16x1xf32> to vector<16x1xf32>
    %162 = vector.broadcast %161 : vector<16x1xf32> to vector<16x128xf32>
    %163 = arith.select %160, %162, %152 : vector<16x128xi1>, vector<16x128xf32>
    %164 = vector.broadcast %158 : vector<16x1xf32> to vector<16x128xf32>
    %165 = arith.cmpf oge, %156, %164 : vector<16x128xf32>
    %cst_35 = arith.constant -1.000000e+30 : f32
    %166 = vector.broadcast %cst_35 : f32 to vector<16x128xf32>
    %167 = arith.select %165, %166, %156 : vector<16x128xi1>, vector<16x128xf32>
    %cst_36 = arith.constant dense<0xFF800000> : vector<16xf32>
    %168 = vector.multi_reduction <maximumf>, %167, %cst_36 [1] : vector<16x128xf32> to vector<16xf32>
    %169 = vector.shape_cast %168 : vector<16xf32> to vector<16x1xf32>
    %c14_i32 = arith.constant 14 : i32
    %170 = vector.broadcast %c14_i32 : i32 to vector<16x128xi32>
    %171 = arith.cmpi eq, %12, %170 : vector<16x128xi32>
    %172 = vector.shape_cast %169 : vector<16x1xf32> to vector<16x1xf32>
    %173 = vector.broadcast %172 : vector<16x1xf32> to vector<16x128xf32>
    %174 = arith.select %171, %173, %163 : vector<16x128xi1>, vector<16x128xf32>
    %175 = vector.broadcast %169 : vector<16x1xf32> to vector<16x128xf32>
    %176 = arith.cmpf oge, %167, %175 : vector<16x128xf32>
    %cst_37 = arith.constant -1.000000e+30 : f32
    %177 = vector.broadcast %cst_37 : f32 to vector<16x128xf32>
    %178 = arith.select %176, %177, %167 : vector<16x128xi1>, vector<16x128xf32>
    %cst_38 = arith.constant dense<0xFF800000> : vector<16xf32>
    %179 = vector.multi_reduction <maximumf>, %178, %cst_38 [1] : vector<16x128xf32> to vector<16xf32>
    %180 = vector.shape_cast %179 : vector<16xf32> to vector<16x1xf32>
    %c15_i32 = arith.constant 15 : i32
    %181 = vector.broadcast %c15_i32 : i32 to vector<16x128xi32>
    %182 = arith.cmpi eq, %12, %181 : vector<16x128xi32>
    %183 = vector.shape_cast %180 : vector<16x1xf32> to vector<16x1xf32>
    %184 = vector.broadcast %183 : vector<16x1xf32> to vector<16x128xf32>
    %185 = arith.select %182, %184, %174 : vector<16x128xi1>, vector<16x128xf32>
    %186 = vector.broadcast %180 : vector<16x1xf32> to vector<16x128xf32>
    %187 = arith.cmpf oge, %178, %186 : vector<16x128xf32>
    %cst_39 = arith.constant -1.000000e+30 : f32
    %188 = vector.broadcast %cst_39 : f32 to vector<16x128xf32>
    %189 = arith.select %187, %188, %178 : vector<16x128xi1>, vector<16x128xf32>
    %cst_40 = arith.constant dense<0xFF800000> : vector<16xf32>
    %190 = vector.multi_reduction <maximumf>, %189, %cst_40 [1] : vector<16x128xf32> to vector<16xf32>
    %191 = vector.shape_cast %190 : vector<16xf32> to vector<16x1xf32>
    %c16_i32 = arith.constant 16 : i32
    %192 = vector.broadcast %c16_i32 : i32 to vector<16x128xi32>
    %193 = arith.cmpi eq, %12, %192 : vector<16x128xi32>
    %194 = vector.shape_cast %191 : vector<16x1xf32> to vector<16x1xf32>
    %195 = vector.broadcast %194 : vector<16x1xf32> to vector<16x128xf32>
    %196 = arith.select %193, %195, %185 : vector<16x128xi1>, vector<16x128xf32>
    %197 = vector.broadcast %191 : vector<16x1xf32> to vector<16x128xf32>
    %198 = arith.cmpf oge, %189, %197 : vector<16x128xf32>
    %cst_41 = arith.constant -1.000000e+30 : f32
    %199 = vector.broadcast %cst_41 : f32 to vector<16x128xf32>
    %200 = arith.select %198, %199, %189 : vector<16x128xi1>, vector<16x128xf32>
    %cst_42 = arith.constant dense<0xFF800000> : vector<16xf32>
    %201 = vector.multi_reduction <maximumf>, %200, %cst_42 [1] : vector<16x128xf32> to vector<16xf32>
    %202 = vector.shape_cast %201 : vector<16xf32> to vector<16x1xf32>
    %c17_i32 = arith.constant 17 : i32
    %203 = vector.broadcast %c17_i32 : i32 to vector<16x128xi32>
    %204 = arith.cmpi eq, %12, %203 : vector<16x128xi32>
    %205 = vector.shape_cast %202 : vector<16x1xf32> to vector<16x1xf32>
    %206 = vector.broadcast %205 : vector<16x1xf32> to vector<16x128xf32>
    %207 = arith.select %204, %206, %196 : vector<16x128xi1>, vector<16x128xf32>
    %208 = vector.broadcast %202 : vector<16x1xf32> to vector<16x128xf32>
    %209 = arith.cmpf oge, %200, %208 : vector<16x128xf32>
    %cst_43 = arith.constant -1.000000e+30 : f32
    %210 = vector.broadcast %cst_43 : f32 to vector<16x128xf32>
    %211 = arith.select %209, %210, %200 : vector<16x128xi1>, vector<16x128xf32>
    %cst_44 = arith.constant dense<0xFF800000> : vector<16xf32>
    %212 = vector.multi_reduction <maximumf>, %211, %cst_44 [1] : vector<16x128xf32> to vector<16xf32>
    %213 = vector.shape_cast %212 : vector<16xf32> to vector<16x1xf32>
    %c18_i32 = arith.constant 18 : i32
    %214 = vector.broadcast %c18_i32 : i32 to vector<16x128xi32>
    %215 = arith.cmpi eq, %12, %214 : vector<16x128xi32>
    %216 = vector.shape_cast %213 : vector<16x1xf32> to vector<16x1xf32>
    %217 = vector.broadcast %216 : vector<16x1xf32> to vector<16x128xf32>
    %218 = arith.select %215, %217, %207 : vector<16x128xi1>, vector<16x128xf32>
    %219 = vector.broadcast %213 : vector<16x1xf32> to vector<16x128xf32>
    %220 = arith.cmpf oge, %211, %219 : vector<16x128xf32>
    %cst_45 = arith.constant -1.000000e+30 : f32
    %221 = vector.broadcast %cst_45 : f32 to vector<16x128xf32>
    %222 = arith.select %220, %221, %211 : vector<16x128xi1>, vector<16x128xf32>
    %cst_46 = arith.constant dense<0xFF800000> : vector<16xf32>
    %223 = vector.multi_reduction <maximumf>, %222, %cst_46 [1] : vector<16x128xf32> to vector<16xf32>
    %224 = vector.shape_cast %223 : vector<16xf32> to vector<16x1xf32>
    %c19_i32 = arith.constant 19 : i32
    %225 = vector.broadcast %c19_i32 : i32 to vector<16x128xi32>
    %226 = arith.cmpi eq, %12, %225 : vector<16x128xi32>
    %227 = vector.shape_cast %224 : vector<16x1xf32> to vector<16x1xf32>
    %228 = vector.broadcast %227 : vector<16x1xf32> to vector<16x128xf32>
    %229 = arith.select %226, %228, %218 : vector<16x128xi1>, vector<16x128xf32>
    %230 = vector.broadcast %224 : vector<16x1xf32> to vector<16x128xf32>
    %231 = arith.cmpf oge, %222, %230 : vector<16x128xf32>
    %cst_47 = arith.constant -1.000000e+30 : f32
    %232 = vector.broadcast %cst_47 : f32 to vector<16x128xf32>
    %233 = arith.select %231, %232, %222 : vector<16x128xi1>, vector<16x128xf32>
    %cst_48 = arith.constant dense<0xFF800000> : vector<16xf32>
    %234 = vector.multi_reduction <maximumf>, %233, %cst_48 [1] : vector<16x128xf32> to vector<16xf32>
    %235 = vector.shape_cast %234 : vector<16xf32> to vector<16x1xf32>
    %c20_i32 = arith.constant 20 : i32
    %236 = vector.broadcast %c20_i32 : i32 to vector<16x128xi32>
    %237 = arith.cmpi eq, %12, %236 : vector<16x128xi32>
    %238 = vector.shape_cast %235 : vector<16x1xf32> to vector<16x1xf32>
    %239 = vector.broadcast %238 : vector<16x1xf32> to vector<16x128xf32>
    %240 = arith.select %237, %239, %229 : vector<16x128xi1>, vector<16x128xf32>
    %241 = vector.broadcast %235 : vector<16x1xf32> to vector<16x128xf32>
    %242 = arith.cmpf oge, %233, %241 : vector<16x128xf32>
    %cst_49 = arith.constant -1.000000e+30 : f32
    %243 = vector.broadcast %cst_49 : f32 to vector<16x128xf32>
    %244 = arith.select %242, %243, %233 : vector<16x128xi1>, vector<16x128xf32>
    %cst_50 = arith.constant dense<0xFF800000> : vector<16xf32>
    %245 = vector.multi_reduction <maximumf>, %244, %cst_50 [1] : vector<16x128xf32> to vector<16xf32>
    %246 = vector.shape_cast %245 : vector<16xf32> to vector<16x1xf32>
    %c21_i32 = arith.constant 21 : i32
    %247 = vector.broadcast %c21_i32 : i32 to vector<16x128xi32>
    %248 = arith.cmpi eq, %12, %247 : vector<16x128xi32>
    %249 = vector.shape_cast %246 : vector<16x1xf32> to vector<16x1xf32>
    %250 = vector.broadcast %249 : vector<16x1xf32> to vector<16x128xf32>
    %251 = arith.select %248, %250, %240 : vector<16x128xi1>, vector<16x128xf32>
    %252 = vector.broadcast %246 : vector<16x1xf32> to vector<16x128xf32>
    %253 = arith.cmpf oge, %244, %252 : vector<16x128xf32>
    %cst_51 = arith.constant -1.000000e+30 : f32
    %254 = vector.broadcast %cst_51 : f32 to vector<16x128xf32>
    %255 = arith.select %253, %254, %244 : vector<16x128xi1>, vector<16x128xf32>
    %cst_52 = arith.constant dense<0xFF800000> : vector<16xf32>
    %256 = vector.multi_reduction <maximumf>, %255, %cst_52 [1] : vector<16x128xf32> to vector<16xf32>
    %257 = vector.shape_cast %256 : vector<16xf32> to vector<16x1xf32>
    %c22_i32 = arith.constant 22 : i32
    %258 = vector.broadcast %c22_i32 : i32 to vector<16x128xi32>
    %259 = arith.cmpi eq, %12, %258 : vector<16x128xi32>
    %260 = vector.shape_cast %257 : vector<16x1xf32> to vector<16x1xf32>
    %261 = vector.broadcast %260 : vector<16x1xf32> to vector<16x128xf32>
    %262 = arith.select %259, %261, %251 : vector<16x128xi1>, vector<16x128xf32>
    %263 = vector.broadcast %257 : vector<16x1xf32> to vector<16x128xf32>
    %264 = arith.cmpf oge, %255, %263 : vector<16x128xf32>
    %cst_53 = arith.constant -1.000000e+30 : f32
    %265 = vector.broadcast %cst_53 : f32 to vector<16x128xf32>
    %266 = arith.select %264, %265, %255 : vector<16x128xi1>, vector<16x128xf32>
    %cst_54 = arith.constant dense<0xFF800000> : vector<16xf32>
    %267 = vector.multi_reduction <maximumf>, %266, %cst_54 [1] : vector<16x128xf32> to vector<16xf32>
    %268 = vector.shape_cast %267 : vector<16xf32> to vector<16x1xf32>
    %c23_i32 = arith.constant 23 : i32
    %269 = vector.broadcast %c23_i32 : i32 to vector<16x128xi32>
    %270 = arith.cmpi eq, %12, %269 : vector<16x128xi32>
    %271 = vector.shape_cast %268 : vector<16x1xf32> to vector<16x1xf32>
    %272 = vector.broadcast %271 : vector<16x1xf32> to vector<16x128xf32>
    %273 = arith.select %270, %272, %262 : vector<16x128xi1>, vector<16x128xf32>
    %274 = vector.broadcast %268 : vector<16x1xf32> to vector<16x128xf32>
    %275 = arith.cmpf oge, %266, %274 : vector<16x128xf32>
    %cst_55 = arith.constant -1.000000e+30 : f32
    %276 = vector.broadcast %cst_55 : f32 to vector<16x128xf32>
    %277 = arith.select %275, %276, %266 : vector<16x128xi1>, vector<16x128xf32>
    %cst_56 = arith.constant dense<0xFF800000> : vector<16xf32>
    %278 = vector.multi_reduction <maximumf>, %277, %cst_56 [1] : vector<16x128xf32> to vector<16xf32>
    %279 = vector.shape_cast %278 : vector<16xf32> to vector<16x1xf32>
    %c24_i32 = arith.constant 24 : i32
    %280 = vector.broadcast %c24_i32 : i32 to vector<16x128xi32>
    %281 = arith.cmpi eq, %12, %280 : vector<16x128xi32>
    %282 = vector.shape_cast %279 : vector<16x1xf32> to vector<16x1xf32>
    %283 = vector.broadcast %282 : vector<16x1xf32> to vector<16x128xf32>
    %284 = arith.select %281, %283, %273 : vector<16x128xi1>, vector<16x128xf32>
    %285 = vector.broadcast %279 : vector<16x1xf32> to vector<16x128xf32>
    %286 = arith.cmpf oge, %277, %285 : vector<16x128xf32>
    %cst_57 = arith.constant -1.000000e+30 : f32
    %287 = vector.broadcast %cst_57 : f32 to vector<16x128xf32>
    %288 = arith.select %286, %287, %277 : vector<16x128xi1>, vector<16x128xf32>
    %cst_58 = arith.constant dense<0xFF800000> : vector<16xf32>
    %289 = vector.multi_reduction <maximumf>, %288, %cst_58 [1] : vector<16x128xf32> to vector<16xf32>
    %290 = vector.shape_cast %289 : vector<16xf32> to vector<16x1xf32>
    %c25_i32 = arith.constant 25 : i32
    %291 = vector.broadcast %c25_i32 : i32 to vector<16x128xi32>
    %292 = arith.cmpi eq, %12, %291 : vector<16x128xi32>
    %293 = vector.shape_cast %290 : vector<16x1xf32> to vector<16x1xf32>
    %294 = vector.broadcast %293 : vector<16x1xf32> to vector<16x128xf32>
    %295 = arith.select %292, %294, %284 : vector<16x128xi1>, vector<16x128xf32>
    %296 = vector.broadcast %290 : vector<16x1xf32> to vector<16x128xf32>
    %297 = arith.cmpf oge, %288, %296 : vector<16x128xf32>
    %cst_59 = arith.constant -1.000000e+30 : f32
    %298 = vector.broadcast %cst_59 : f32 to vector<16x128xf32>
    %299 = arith.select %297, %298, %288 : vector<16x128xi1>, vector<16x128xf32>
    %cst_60 = arith.constant dense<0xFF800000> : vector<16xf32>
    %300 = vector.multi_reduction <maximumf>, %299, %cst_60 [1] : vector<16x128xf32> to vector<16xf32>
    %301 = vector.shape_cast %300 : vector<16xf32> to vector<16x1xf32>
    %c26_i32 = arith.constant 26 : i32
    %302 = vector.broadcast %c26_i32 : i32 to vector<16x128xi32>
    %303 = arith.cmpi eq, %12, %302 : vector<16x128xi32>
    %304 = vector.shape_cast %301 : vector<16x1xf32> to vector<16x1xf32>
    %305 = vector.broadcast %304 : vector<16x1xf32> to vector<16x128xf32>
    %306 = arith.select %303, %305, %295 : vector<16x128xi1>, vector<16x128xf32>
    %307 = vector.broadcast %301 : vector<16x1xf32> to vector<16x128xf32>
    %308 = arith.cmpf oge, %299, %307 : vector<16x128xf32>
    %cst_61 = arith.constant -1.000000e+30 : f32
    %309 = vector.broadcast %cst_61 : f32 to vector<16x128xf32>
    %310 = arith.select %308, %309, %299 : vector<16x128xi1>, vector<16x128xf32>
    %cst_62 = arith.constant dense<0xFF800000> : vector<16xf32>
    %311 = vector.multi_reduction <maximumf>, %310, %cst_62 [1] : vector<16x128xf32> to vector<16xf32>
    %312 = vector.shape_cast %311 : vector<16xf32> to vector<16x1xf32>
    %c27_i32 = arith.constant 27 : i32
    %313 = vector.broadcast %c27_i32 : i32 to vector<16x128xi32>
    %314 = arith.cmpi eq, %12, %313 : vector<16x128xi32>
    %315 = vector.shape_cast %312 : vector<16x1xf32> to vector<16x1xf32>
    %316 = vector.broadcast %315 : vector<16x1xf32> to vector<16x128xf32>
    %317 = arith.select %314, %316, %306 : vector<16x128xi1>, vector<16x128xf32>
    %318 = vector.broadcast %312 : vector<16x1xf32> to vector<16x128xf32>
    %319 = arith.cmpf oge, %310, %318 : vector<16x128xf32>
    %cst_63 = arith.constant -1.000000e+30 : f32
    %320 = vector.broadcast %cst_63 : f32 to vector<16x128xf32>
    %321 = arith.select %319, %320, %310 : vector<16x128xi1>, vector<16x128xf32>
    %cst_64 = arith.constant dense<0xFF800000> : vector<16xf32>
    %322 = vector.multi_reduction <maximumf>, %321, %cst_64 [1] : vector<16x128xf32> to vector<16xf32>
    %323 = vector.shape_cast %322 : vector<16xf32> to vector<16x1xf32>
    %c28_i32 = arith.constant 28 : i32
    %324 = vector.broadcast %c28_i32 : i32 to vector<16x128xi32>
    %325 = arith.cmpi eq, %12, %324 : vector<16x128xi32>
    %326 = vector.shape_cast %323 : vector<16x1xf32> to vector<16x1xf32>
    %327 = vector.broadcast %326 : vector<16x1xf32> to vector<16x128xf32>
    %328 = arith.select %325, %327, %317 : vector<16x128xi1>, vector<16x128xf32>
    %329 = vector.broadcast %323 : vector<16x1xf32> to vector<16x128xf32>
    %330 = arith.cmpf oge, %321, %329 : vector<16x128xf32>
    %cst_65 = arith.constant -1.000000e+30 : f32
    %331 = vector.broadcast %cst_65 : f32 to vector<16x128xf32>
    %332 = arith.select %330, %331, %321 : vector<16x128xi1>, vector<16x128xf32>
    %cst_66 = arith.constant dense<0xFF800000> : vector<16xf32>
    %333 = vector.multi_reduction <maximumf>, %332, %cst_66 [1] : vector<16x128xf32> to vector<16xf32>
    %334 = vector.shape_cast %333 : vector<16xf32> to vector<16x1xf32>
    %c29_i32 = arith.constant 29 : i32
    %335 = vector.broadcast %c29_i32 : i32 to vector<16x128xi32>
    %336 = arith.cmpi eq, %12, %335 : vector<16x128xi32>
    %337 = vector.shape_cast %334 : vector<16x1xf32> to vector<16x1xf32>
    %338 = vector.broadcast %337 : vector<16x1xf32> to vector<16x128xf32>
    %339 = arith.select %336, %338, %328 : vector<16x128xi1>, vector<16x128xf32>
    %340 = vector.broadcast %334 : vector<16x1xf32> to vector<16x128xf32>
    %341 = arith.cmpf oge, %332, %340 : vector<16x128xf32>
    %cst_67 = arith.constant -1.000000e+30 : f32
    %342 = vector.broadcast %cst_67 : f32 to vector<16x128xf32>
    %343 = arith.select %341, %342, %332 : vector<16x128xi1>, vector<16x128xf32>
    %cst_68 = arith.constant dense<0xFF800000> : vector<16xf32>
    %344 = vector.multi_reduction <maximumf>, %343, %cst_68 [1] : vector<16x128xf32> to vector<16xf32>
    %345 = vector.shape_cast %344 : vector<16xf32> to vector<16x1xf32>
    %c30_i32 = arith.constant 30 : i32
    %346 = vector.broadcast %c30_i32 : i32 to vector<16x128xi32>
    %347 = arith.cmpi eq, %12, %346 : vector<16x128xi32>
    %348 = vector.shape_cast %345 : vector<16x1xf32> to vector<16x1xf32>
    %349 = vector.broadcast %348 : vector<16x1xf32> to vector<16x128xf32>
    %350 = arith.select %347, %349, %339 : vector<16x128xi1>, vector<16x128xf32>
    %351 = vector.broadcast %345 : vector<16x1xf32> to vector<16x128xf32>
    %352 = arith.cmpf oge, %343, %351 : vector<16x128xf32>
    %cst_69 = arith.constant -1.000000e+30 : f32
    %353 = vector.broadcast %cst_69 : f32 to vector<16x128xf32>
    %354 = arith.select %352, %353, %343 : vector<16x128xi1>, vector<16x128xf32>
    %cst_70 = arith.constant dense<0xFF800000> : vector<16xf32>
    %355 = vector.multi_reduction <maximumf>, %354, %cst_70 [1] : vector<16x128xf32> to vector<16xf32>
    %356 = vector.shape_cast %355 : vector<16xf32> to vector<16x1xf32>
    %c31_i32 = arith.constant 31 : i32
    %357 = vector.broadcast %c31_i32 : i32 to vector<16x128xi32>
    %358 = arith.cmpi eq, %12, %357 : vector<16x128xi32>
    %359 = vector.shape_cast %356 : vector<16x1xf32> to vector<16x1xf32>
    %360 = vector.broadcast %359 : vector<16x1xf32> to vector<16x128xf32>
    %361 = arith.select %358, %360, %350 : vector<16x128xi1>, vector<16x128xf32>
    %362 = arith.index_cast %arg1 : i32 to index
    %c0_71 = arith.constant 0 : index
    %c0_72 = arith.constant 0 : index
    %363 = vector.load %arg7[%362, %c0_71, %c0_72] : memref<1x16x128xf32, #tpu.memory_space<vmem>>, vector<1x16x128xf32>
    %364 = vector.shape_cast %363 : vector<1x16x128xf32> to vector<16x128xf32>
    %365 = vector.shape_cast %361 : vector<16x128xf32> to vector<1x16x128xf32>
    tpu.vector_store %arg7[%362, %c0_71, %c0_72], %365 {strides = array<i32>} : memref<1x16x128xf32, #tpu.memory_space<vmem>>, vector<1x16x128xf32>,
    %c0_i32_73 = arith.constant 0 : i32
    %366 = arith.cmpi eq, %arg1, %c0_i32_73 : i32
    %367 = arith.extui %366 : i1 to i32
    %c0_i32_74 = arith.constant 0 : i32
    %368 = arith.cmpi ne, %367, %c0_i32_74 : i32
    scf.if %368 {
      %c0_75 = arith.constant 0 : index
      %c0_76 = arith.constant 0 : index
      %c0_77 = arith.constant 0 : index
      %369 = vector.load %arg7[%c0_75, %c0_76, %c0_77] : memref<1x16x128xf32, #tpu.memory_space<vmem>>, vector<1x16x128xf32>
      %cst_78 = arith.constant dense<0xFF800000> : vector<1x16xf32>
      %370 = vector.multi_reduction <maximumf>, %369, %cst_78 [2] : vector<1x16x128xf32> to vector<1x16xf32>
      %371 = vector.shape_cast %370 : vector<1x16xf32> to vector<1x16x1xf32>
      %cst_79 = arith.constant dense<0xFF800000> : vector<16x1xf32>
      %372 = vector.multi_reduction <maximumf>, %371, %cst_79 [0] : vector<1x16x1xf32> to vector<16x1xf32>
      %373 = vector.shape_cast %372 : vector<16x1xf32> to vector<1x16x1xf32>
      %374 = vector.broadcast %373 : vector<1x16x1xf32> to vector<1x16x128xf32>
      %375 = arith.cmpf oge, %369, %374 : vector<1x16x128xf32>
      %cst_80 = arith.constant -1.000000e+30 : f32
      %376 = vector.broadcast %cst_80 : f32 to vector<1x16x128xf32>
      %377 = arith.select %375, %376, %369 : vector<1x16x128xi1>, vector<1x16x128xf32>
      %cst_81 = arith.constant dense<0xFF800000> : vector<1x16xf32>
      %378 = vector.multi_reduction <maximumf>, %377, %cst_81 [2] : vector<1x16x128xf32> to vector<1x16xf32>
      %379 = vector.shape_cast %378 : vector<1x16xf32> to vector<1x16x1xf32>
      %cst_82 = arith.constant dense<0xFF800000> : vector<16x1xf32>
      %380 = vector.multi_reduction <maximumf>, %379, %cst_82 [0] : vector<1x16x1xf32> to vector<16x1xf32>
      %381 = vector.shape_cast %380 : vector<16x1xf32> to vector<1x16x1xf32>
      %382 = vector.broadcast %381 : vector<1x16x1xf32> to vector<1x16x128xf32>
      %383 = arith.cmpf oge, %377, %382 : vector<1x16x128xf32>
      %cst_83 = arith.constant -1.000000e+30 : f32
      %384 = vector.broadcast %cst_83 : f32 to vector<1x16x128xf32>
      %385 = arith.select %383, %384, %377 : vector<1x16x128xi1>, vector<1x16x128xf32>
      %cst_84 = arith.constant dense<0xFF800000> : vector<1x16xf32>
      %386 = vector.multi_reduction <maximumf>, %385, %cst_84 [2] : vector<1x16x128xf32> to vector<1x16xf32>
      %387 = vector.shape_cast %386 : vector<1x16xf32> to vector<1x16x1xf32>
      %cst_85 = arith.constant dense<0xFF800000> : vector<16x1xf32>
      %388 = vector.multi_reduction <maximumf>, %387, %cst_85 [0] : vector<1x16x1xf32> to vector<16x1xf32>
      %389 = vector.shape_cast %388 : vector<16x1xf32> to vector<1x16x1xf32>
      %390 = vector.broadcast %389 : vector<1x16x1xf32> to vector<1x16x128xf32>
      %391 = arith.cmpf oge, %385, %390 : vector<1x16x128xf32>
      %cst_86 = arith.constant -1.000000e+30 : f32
      %392 = vector.broadcast %cst_86 : f32 to vector<1x16x128xf32>
      %393 = arith.select %391, %392, %385 : vector<1x16x128xi1>, vector<1x16x128xf32>
      %cst_87 = arith.constant dense<0xFF800000> : vector<1x16xf32>
      %394 = vector.multi_reduction <maximumf>, %393, %cst_87 [2] : vector<1x16x128xf32> to vector<1x16xf32>
      %395 = vector.shape_cast %394 : vector<1x16xf32> to vector<1x16x1xf32>
      %cst_88 = arith.constant dense<0xFF800000> : vector<16x1xf32>
      %396 = vector.multi_reduction <maximumf>, %395, %cst_88 [0] : vector<1x16x1xf32> to vector<16x1xf32>
      %397 = vector.shape_cast %396 : vector<16x1xf32> to vector<1x16x1xf32>
      %398 = vector.broadcast %397 : vector<1x16x1xf32> to vector<1x16x128xf32>
      %399 = arith.cmpf oge, %393, %398 : vector<1x16x128xf32>
      %cst_89 = arith.constant -1.000000e+30 : f32
      %400 = vector.broadcast %cst_89 : f32 to vector<1x16x128xf32>
      %401 = arith.select %399, %400, %393 : vector<1x16x128xi1>, vector<1x16x128xf32>
      %cst_90 = arith.constant dense<0xFF800000> : vector<1x16xf32>
      %402 = vector.multi_reduction <maximumf>, %401, %cst_90 [2] : vector<1x16x128xf32> to vector<1x16xf32>
      %403 = vector.shape_cast %402 : vector<1x16xf32> to vector<1x16x1xf32>
      %cst_91 = arith.constant dense<0xFF800000> : vector<16x1xf32>
      %404 = vector.multi_reduction <maximumf>, %403, %cst_91 [0] : vector<1x16x1xf32> to vector<16x1xf32>
      %405 = vector.shape_cast %404 : vector<16x1xf32> to vector<1x16x1xf32>
      %406 = vector.broadcast %405 : vector<1x16x1xf32> to vector<1x16x128xf32>
      %407 = arith.cmpf oge, %401, %406 : vector<1x16x128xf32>
      %cst_92 = arith.constant -1.000000e+30 : f32
      %408 = vector.broadcast %cst_92 : f32 to vector<1x16x128xf32>
      %409 = arith.select %407, %408, %401 : vector<1x16x128xi1>, vector<1x16x128xf32>
      %cst_93 = arith.constant dense<0xFF800000> : vector<1x16xf32>
      %410 = vector.multi_reduction <maximumf>, %409, %cst_93 [2] : vector<1x16x128xf32> to vector<1x16xf32>
      %411 = vector.shape_cast %410 : vector<1x16xf32> to vector<1x16x1xf32>
      %cst_94 = arith.constant dense<0xFF800000> : vector<16x1xf32>
      %412 = vector.multi_reduction <maximumf>, %411, %cst_94 [0] : vector<1x16x1xf32> to vector<16x1xf32>
      %413 = vector.shape_cast %412 : vector<16x1xf32> to vector<1x16x1xf32>
      %414 = vector.broadcast %413 : vector<1x16x1xf32> to vector<1x16x128xf32>
      %415 = arith.cmpf oge, %409, %414 : vector<1x16x128xf32>
      %cst_95 = arith.constant -1.000000e+30 : f32
      %416 = vector.broadcast %cst_95 : f32 to vector<1x16x128xf32>
      %417 = arith.select %415, %416, %409 : vector<1x16x128xi1>, vector<1x16x128xf32>
      %cst_96 = arith.constant dense<0xFF800000> : vector<1x16xf32>
      %418 = vector.multi_reduction <maximumf>, %417, %cst_96 [2] : vector<1x16x128xf32> to vector<1x16xf32>
      %419 = vector.shape_cast %418 : vector<1x16xf32> to vector<1x16x1xf32>
      %cst_97 = arith.constant dense<0xFF800000> : vector<16x1xf32>
      %420 = vector.multi_reduction <maximumf>, %419, %cst_97 [0] : vector<1x16x1xf32> to vector<16x1xf32>
      %421 = vector.shape_cast %420 : vector<16x1xf32> to vector<1x16x1xf32>
      %422 = vector.broadcast %421 : vector<1x16x1xf32> to vector<1x16x128xf32>
      %423 = arith.cmpf oge, %417, %422 : vector<1x16x128xf32>
      %cst_98 = arith.constant -1.000000e+30 : f32
      %424 = vector.broadcast %cst_98 : f32 to vector<1x16x128xf32>
      %425 = arith.select %423, %424, %417 : vector<1x16x128xi1>, vector<1x16x128xf32>
      %cst_99 = arith.constant dense<0xFF800000> : vector<1x16xf32>
      %426 = vector.multi_reduction <maximumf>, %425, %cst_99 [2] : vector<1x16x128xf32> to vector<1x16xf32>
      %427 = vector.shape_cast %426 : vector<1x16xf32> to vector<1x16x1xf32>
      %cst_100 = arith.constant dense<0xFF800000> : vector<16x1xf32>
      %428 = vector.multi_reduction <maximumf>, %427, %cst_100 [0] : vector<1x16x1xf32> to vector<16x1xf32>
      %429 = vector.shape_cast %428 : vector<16x1xf32> to vector<1x16x1xf32>
      %430 = vector.broadcast %429 : vector<1x16x1xf32> to vector<1x16x128xf32>
      %431 = arith.cmpf oge, %425, %430 : vector<1x16x128xf32>
      %cst_101 = arith.constant -1.000000e+30 : f32
      %432 = vector.broadcast %cst_101 : f32 to vector<1x16x128xf32>
      %433 = arith.select %431, %432, %425 : vector<1x16x128xi1>, vector<1x16x128xf32>
      %cst_102 = arith.constant dense<0xFF800000> : vector<1x16xf32>
      %434 = vector.multi_reduction <maximumf>, %433, %cst_102 [2] : vector<1x16x128xf32> to vector<1x16xf32>
      %435 = vector.shape_cast %434 : vector<1x16xf32> to vector<1x16x1xf32>
      %cst_103 = arith.constant dense<0xFF800000> : vector<16x1xf32>
      %436 = vector.multi_reduction <maximumf>, %435, %cst_103 [0] : vector<1x16x1xf32> to vector<16x1xf32>
      %437 = vector.shape_cast %436 : vector<16x1xf32> to vector<1x16x1xf32>
      %438 = vector.broadcast %437 : vector<1x16x1xf32> to vector<1x16x128xf32>
      %439 = arith.cmpf oge, %433, %438 : vector<1x16x128xf32>
      %cst_104 = arith.constant -1.000000e+30 : f32
      %440 = vector.broadcast %cst_104 : f32 to vector<1x16x128xf32>
      %441 = arith.select %439, %440, %433 : vector<1x16x128xi1>, vector<1x16x128xf32>
      %cst_105 = arith.constant dense<0xFF800000> : vector<1x16xf32>
      %442 = vector.multi_reduction <maximumf>, %441, %cst_105 [2] : vector<1x16x128xf32> to vector<1x16xf32>
      %443 = vector.shape_cast %442 : vector<1x16xf32> to vector<1x16x1xf32>
      %cst_106 = arith.constant dense<0xFF800000> : vector<16x1xf32>
      %444 = vector.multi_reduction <maximumf>, %443, %cst_106 [0] : vector<1x16x1xf32> to vector<16x1xf32>
      %445 = vector.shape_cast %444 : vector<16x1xf32> to vector<1x16x1xf32>
      %446 = vector.broadcast %445 : vector<1x16x1xf32> to vector<1x16x128xf32>
      %447 = arith.cmpf oge, %441, %446 : vector<1x16x128xf32>
      %cst_107 = arith.constant -1.000000e+30 : f32
      %448 = vector.broadcast %cst_107 : f32 to vector<1x16x128xf32>
      %449 = arith.select %447, %448, %441 : vector<1x16x128xi1>, vector<1x16x128xf32>
      %cst_108 = arith.constant dense<0xFF800000> : vector<1x16xf32>
      %450 = vector.multi_reduction <maximumf>, %449, %cst_108 [2] : vector<1x16x128xf32> to vector<1x16xf32>
      %451 = vector.shape_cast %450 : vector<1x16xf32> to vector<1x16x1xf32>
      %cst_109 = arith.constant dense<0xFF800000> : vector<16x1xf32>
      %452 = vector.multi_reduction <maximumf>, %451, %cst_109 [0] : vector<1x16x1xf32> to vector<16x1xf32>
      %453 = vector.shape_cast %452 : vector<16x1xf32> to vector<1x16x1xf32>
      %454 = vector.broadcast %453 : vector<1x16x1xf32> to vector<1x16x128xf32>
      %455 = arith.cmpf oge, %449, %454 : vector<1x16x128xf32>
      %cst_110 = arith.constant -1.000000e+30 : f32
      %456 = vector.broadcast %cst_110 : f32 to vector<1x16x128xf32>
      %457 = arith.select %455, %456, %449 : vector<1x16x128xi1>, vector<1x16x128xf32>
      %cst_111 = arith.constant dense<0xFF800000> : vector<1x16xf32>
      %458 = vector.multi_reduction <maximumf>, %457, %cst_111 [2] : vector<1x16x128xf32> to vector<1x16xf32>
      %459 = vector.shape_cast %458 : vector<1x16xf32> to vector<1x16x1xf32>
      %cst_112 = arith.constant dense<0xFF800000> : vector<16x1xf32>
      %460 = vector.multi_reduction <maximumf>, %459, %cst_112 [0] : vector<1x16x1xf32> to vector<16x1xf32>
      %461 = vector.shape_cast %460 : vector<16x1xf32> to vector<1x16x1xf32>
      %462 = vector.broadcast %461 : vector<1x16x1xf32> to vector<1x16x128xf32>
      %463 = arith.cmpf oge, %457, %462 : vector<1x16x128xf32>
      %cst_113 = arith.constant -1.000000e+30 : f32
      %464 = vector.broadcast %cst_113 : f32 to vector<1x16x128xf32>
      %465 = arith.select %463, %464, %457 : vector<1x16x128xi1>, vector<1x16x128xf32>
      %cst_114 = arith.constant dense<0xFF800000> : vector<1x16xf32>
      %466 = vector.multi_reduction <maximumf>, %465, %cst_114 [2] : vector<1x16x128xf32> to vector<1x16xf32>
      %467 = vector.shape_cast %466 : vector<1x16xf32> to vector<1x16x1xf32>
      %cst_115 = arith.constant dense<0xFF800000> : vector<16x1xf32>
      %468 = vector.multi_reduction <maximumf>, %467, %cst_115 [0] : vector<1x16x1xf32> to vector<16x1xf32>
      %469 = vector.shape_cast %468 : vector<16x1xf32> to vector<1x16x1xf32>
      %470 = vector.broadcast %469 : vector<1x16x1xf32> to vector<1x16x128xf32>
      %471 = arith.cmpf oge, %465, %470 : vector<1x16x128xf32>
      %cst_116 = arith.constant -1.000000e+30 : f32
      %472 = vector.broadcast %cst_116 : f32 to vector<1x16x128xf32>
      %473 = arith.select %471, %472, %465 : vector<1x16x128xi1>, vector<1x16x128xf32>
      %cst_117 = arith.constant dense<0xFF800000> : vector<1x16xf32>
      %474 = vector.multi_reduction <maximumf>, %473, %cst_117 [2] : vector<1x16x128xf32> to vector<1x16xf32>
      %475 = vector.shape_cast %474 : vector<1x16xf32> to vector<1x16x1xf32>
      %cst_118 = arith.constant dense<0xFF800000> : vector<16x1xf32>
      %476 = vector.multi_reduction <maximumf>, %475, %cst_118 [0] : vector<1x16x1xf32> to vector<16x1xf32>
      %477 = vector.shape_cast %476 : vector<16x1xf32> to vector<1x16x1xf32>
      %478 = vector.broadcast %477 : vector<1x16x1xf32> to vector<1x16x128xf32>
      %479 = arith.cmpf oge, %473, %478 : vector<1x16x128xf32>
      %cst_119 = arith.constant -1.000000e+30 : f32
      %480 = vector.broadcast %cst_119 : f32 to vector<1x16x128xf32>
      %481 = arith.select %479, %480, %473 : vector<1x16x128xi1>, vector<1x16x128xf32>
      %cst_120 = arith.constant dense<0xFF800000> : vector<1x16xf32>
      %482 = vector.multi_reduction <maximumf>, %481, %cst_120 [2] : vector<1x16x128xf32> to vector<1x16xf32>
      %483 = vector.shape_cast %482 : vector<1x16xf32> to vector<1x16x1xf32>
      %cst_121 = arith.constant dense<0xFF800000> : vector<16x1xf32>
      %484 = vector.multi_reduction <maximumf>, %483, %cst_121 [0] : vector<1x16x1xf32> to vector<16x1xf32>
      %485 = vector.shape_cast %484 : vector<16x1xf32> to vector<1x16x1xf32>
      %486 = vector.broadcast %485 : vector<1x16x1xf32> to vector<1x16x128xf32>
      %487 = arith.cmpf oge, %481, %486 : vector<1x16x128xf32>
      %cst_122 = arith.constant -1.000000e+30 : f32
      %488 = vector.broadcast %cst_122 : f32 to vector<1x16x128xf32>
      %489 = arith.select %487, %488, %481 : vector<1x16x128xi1>, vector<1x16x128xf32>
      %cst_123 = arith.constant dense<0xFF800000> : vector<1x16xf32>
      %490 = vector.multi_reduction <maximumf>, %489, %cst_123 [2] : vector<1x16x128xf32> to vector<1x16xf32>
      %491 = vector.shape_cast %490 : vector<1x16xf32> to vector<1x16x1xf32>
      %cst_124 = arith.constant dense<0xFF800000> : vector<16x1xf32>
      %492 = vector.multi_reduction <maximumf>, %491, %cst_124 [0] : vector<1x16x1xf32> to vector<16x1xf32>
      %493 = vector.shape_cast %492 : vector<16x1xf32> to vector<1x16x1xf32>
      %494 = vector.broadcast %493 : vector<1x16x1xf32> to vector<1x16x128xf32>
      %495 = arith.cmpf oge, %489, %494 : vector<1x16x128xf32>
      %cst_125 = arith.constant -1.000000e+30 : f32
      %496 = vector.broadcast %cst_125 : f32 to vector<1x16x128xf32>
      %497 = arith.select %495, %496, %489 : vector<1x16x128xi1>, vector<1x16x128xf32>
      %cst_126 = arith.constant dense<0xFF800000> : vector<1x16xf32>
      %498 = vector.multi_reduction <maximumf>, %497, %cst_126 [2] : vector<1x16x128xf32> to vector<1x16xf32>
      %499 = vector.shape_cast %498 : vector<1x16xf32> to vector<1x16x1xf32>
      %cst_127 = arith.constant dense<0xFF800000> : vector<16x1xf32>
      %500 = vector.multi_reduction <maximumf>, %499, %cst_127 [0] : vector<1x16x1xf32> to vector<16x1xf32>
      %501 = vector.shape_cast %500 : vector<16x1xf32> to vector<1x16x1xf32>
      %502 = vector.broadcast %501 : vector<1x16x1xf32> to vector<1x16x128xf32>
      %503 = arith.cmpf oge, %497, %502 : vector<1x16x128xf32>
      %cst_128 = arith.constant -1.000000e+30 : f32
      %504 = vector.broadcast %cst_128 : f32 to vector<1x16x128xf32>
      %505 = arith.select %503, %504, %497 : vector<1x16x128xi1>, vector<1x16x128xf32>
      %cst_129 = arith.constant dense<0xFF800000> : vector<1x16xf32>
      %506 = vector.multi_reduction <maximumf>, %505, %cst_129 [2] : vector<1x16x128xf32> to vector<1x16xf32>
      %507 = vector.shape_cast %506 : vector<1x16xf32> to vector<1x16x1xf32>
      %cst_130 = arith.constant dense<0xFF800000> : vector<16x1xf32>
      %508 = vector.multi_reduction <maximumf>, %507, %cst_130 [0] : vector<1x16x1xf32> to vector<16x1xf32>
      %509 = vector.shape_cast %508 : vector<16x1xf32> to vector<1x16x1xf32>
      %510 = vector.broadcast %509 : vector<1x16x1xf32> to vector<1x16x128xf32>
      %511 = arith.cmpf oge, %505, %510 : vector<1x16x128xf32>
      %cst_131 = arith.constant -1.000000e+30 : f32
      %512 = vector.broadcast %cst_131 : f32 to vector<1x16x128xf32>
      %513 = arith.select %511, %512, %505 : vector<1x16x128xi1>, vector<1x16x128xf32>
      %cst_132 = arith.constant dense<0xFF800000> : vector<1x16xf32>
      %514 = vector.multi_reduction <maximumf>, %513, %cst_132 [2] : vector<1x16x128xf32> to vector<1x16xf32>
      %515 = vector.shape_cast %514 : vector<1x16xf32> to vector<1x16x1xf32>
      %cst_133 = arith.constant dense<0xFF800000> : vector<16x1xf32>
      %516 = vector.multi_reduction <maximumf>, %515, %cst_133 [0] : vector<1x16x1xf32> to vector<16x1xf32>
      %517 = vector.shape_cast %516 : vector<16x1xf32> to vector<1x16x1xf32>
      %518 = vector.broadcast %517 : vector<1x16x1xf32> to vector<1x16x128xf32>
      %519 = arith.cmpf oge, %513, %518 : vector<1x16x128xf32>
      %cst_134 = arith.constant -1.000000e+30 : f32
      %520 = vector.broadcast %cst_134 : f32 to vector<1x16x128xf32>
      %521 = arith.select %519, %520, %513 : vector<1x16x128xi1>, vector<1x16x128xf32>
      %cst_135 = arith.constant dense<0xFF800000> : vector<1x16xf32>
      %522 = vector.multi_reduction <maximumf>, %521, %cst_135 [2] : vector<1x16x128xf32> to vector<1x16xf32>
      %523 = vector.shape_cast %522 : vector<1x16xf32> to vector<1x16x1xf32>
      %cst_136 = arith.constant dense<0xFF800000> : vector<16x1xf32>
      %524 = vector.multi_reduction <maximumf>, %523, %cst_136 [0] : vector<1x16x1xf32> to vector<16x1xf32>
      %525 = vector.shape_cast %524 : vector<16x1xf32> to vector<1x16x1xf32>
      %526 = vector.broadcast %525 : vector<1x16x1xf32> to vector<1x16x128xf32>
      %527 = arith.cmpf oge, %521, %526 : vector<1x16x128xf32>
      %cst_137 = arith.constant -1.000000e+30 : f32
      %528 = vector.broadcast %cst_137 : f32 to vector<1x16x128xf32>
      %529 = arith.select %527, %528, %521 : vector<1x16x128xi1>, vector<1x16x128xf32>
      %cst_138 = arith.constant dense<0xFF800000> : vector<1x16xf32>
      %530 = vector.multi_reduction <maximumf>, %529, %cst_138 [2] : vector<1x16x128xf32> to vector<1x16xf32>
      %531 = vector.shape_cast %530 : vector<1x16xf32> to vector<1x16x1xf32>
      %cst_139 = arith.constant dense<0xFF800000> : vector<16x1xf32>
      %532 = vector.multi_reduction <maximumf>, %531, %cst_139 [0] : vector<1x16x1xf32> to vector<16x1xf32>
      %533 = vector.shape_cast %532 : vector<16x1xf32> to vector<1x16x1xf32>
      %534 = vector.broadcast %533 : vector<1x16x1xf32> to vector<1x16x128xf32>
      %535 = arith.cmpf oge, %529, %534 : vector<1x16x128xf32>
      %cst_140 = arith.constant -1.000000e+30 : f32
      %536 = vector.broadcast %cst_140 : f32 to vector<1x16x128xf32>
      %537 = arith.select %535, %536, %529 : vector<1x16x128xi1>, vector<1x16x128xf32>
      %cst_141 = arith.constant dense<0xFF800000> : vector<1x16xf32>
      %538 = vector.multi_reduction <maximumf>, %537, %cst_141 [2] : vector<1x16x128xf32> to vector<1x16xf32>
      %539 = vector.shape_cast %538 : vector<1x16xf32> to vector<1x16x1xf32>
      %cst_142 = arith.constant dense<0xFF800000> : vector<16x1xf32>
      %540 = vector.multi_reduction <maximumf>, %539, %cst_142 [0] : vector<1x16x1xf32> to vector<16x1xf32>
      %541 = vector.shape_cast %540 : vector<16x1xf32> to vector<1x16x1xf32>
      %542 = vector.broadcast %541 : vector<1x16x1xf32> to vector<1x16x128xf32>
      %543 = arith.cmpf oge, %537, %542 : vector<1x16x128xf32>
      %cst_143 = arith.constant -1.000000e+30 : f32
      %544 = vector.broadcast %cst_143 : f32 to vector<1x16x128xf32>
      %545 = arith.select %543, %544, %537 : vector<1x16x128xi1>, vector<1x16x128xf32>
      %cst_144 = arith.constant dense<0xFF800000> : vector<1x16xf32>
      %546 = vector.multi_reduction <maximumf>, %545, %cst_144 [2] : vector<1x16x128xf32> to vector<1x16xf32>
      %547 = vector.shape_cast %546 : vector<1x16xf32> to vector<1x16x1xf32>
      %cst_145 = arith.constant dense<0xFF800000> : vector<16x1xf32>
      %548 = vector.multi_reduction <maximumf>, %547, %cst_145 [0] : vector<1x16x1xf32> to vector<16x1xf32>
      %549 = vector.shape_cast %548 : vector<16x1xf32> to vector<1x16x1xf32>
      %550 = vector.broadcast %549 : vector<1x16x1xf32> to vector<1x16x128xf32>
      %551 = arith.cmpf oge, %545, %550 : vector<1x16x128xf32>
      %cst_146 = arith.constant -1.000000e+30 : f32
      %552 = vector.broadcast %cst_146 : f32 to vector<1x16x128xf32>
      %553 = arith.select %551, %552, %545 : vector<1x16x128xi1>, vector<1x16x128xf32>
      %cst_147 = arith.constant dense<0xFF800000> : vector<1x16xf32>
      %554 = vector.multi_reduction <maximumf>, %553, %cst_147 [2] : vector<1x16x128xf32> to vector<1x16xf32>
      %555 = vector.shape_cast %554 : vector<1x16xf32> to vector<1x16x1xf32>
      %cst_148 = arith.constant dense<0xFF800000> : vector<16x1xf32>
      %556 = vector.multi_reduction <maximumf>, %555, %cst_148 [0] : vector<1x16x1xf32> to vector<16x1xf32>
      %557 = vector.shape_cast %556 : vector<16x1xf32> to vector<1x16x1xf32>
      %558 = vector.broadcast %557 : vector<1x16x1xf32> to vector<1x16x128xf32>
      %559 = arith.cmpf oge, %553, %558 : vector<1x16x128xf32>
      %cst_149 = arith.constant -1.000000e+30 : f32
      %560 = vector.broadcast %cst_149 : f32 to vector<1x16x128xf32>
      %561 = arith.select %559, %560, %553 : vector<1x16x128xi1>, vector<1x16x128xf32>
      %cst_150 = arith.constant dense<0xFF800000> : vector<1x16xf32>
      %562 = vector.multi_reduction <maximumf>, %561, %cst_150 [2] : vector<1x16x128xf32> to vector<1x16xf32>
      %563 = vector.shape_cast %562 : vector<1x16xf32> to vector<1x16x1xf32>
      %cst_151 = arith.constant dense<0xFF800000> : vector<16x1xf32>
      %564 = vector.multi_reduction <maximumf>, %563, %cst_151 [0] : vector<1x16x1xf32> to vector<16x1xf32>
      %565 = vector.shape_cast %564 : vector<16x1xf32> to vector<1x16x1xf32>
      %566 = vector.broadcast %565 : vector<1x16x1xf32> to vector<1x16x128xf32>
      %567 = arith.cmpf oge, %561, %566 : vector<1x16x128xf32>
      %cst_152 = arith.constant -1.000000e+30 : f32
      %568 = vector.broadcast %cst_152 : f32 to vector<1x16x128xf32>
      %569 = arith.select %567, %568, %561 : vector<1x16x128xi1>, vector<1x16x128xf32>
      %cst_153 = arith.constant dense<0xFF800000> : vector<1x16xf32>
      %570 = vector.multi_reduction <maximumf>, %569, %cst_153 [2] : vector<1x16x128xf32> to vector<1x16xf32>
      %571 = vector.shape_cast %570 : vector<1x16xf32> to vector<1x16x1xf32>
      %cst_154 = arith.constant dense<0xFF800000> : vector<16x1xf32>
      %572 = vector.multi_reduction <maximumf>, %571, %cst_154 [0] : vector<1x16x1xf32> to vector<16x1xf32>
      %573 = vector.shape_cast %572 : vector<16x1xf32> to vector<1x16x1xf32>
      %574 = vector.broadcast %573 : vector<1x16x1xf32> to vector<1x16x128xf32>
      %575 = arith.cmpf oge, %569, %574 : vector<1x16x128xf32>
      %cst_155 = arith.constant -1.000000e+30 : f32
      %576 = vector.broadcast %cst_155 : f32 to vector<1x16x128xf32>
      %577 = arith.select %575, %576, %569 : vector<1x16x128xi1>, vector<1x16x128xf32>
      %cst_156 = arith.constant dense<0xFF800000> : vector<1x16xf32>
      %578 = vector.multi_reduction <maximumf>, %577, %cst_156 [2] : vector<1x16x128xf32> to vector<1x16xf32>
      %579 = vector.shape_cast %578 : vector<1x16xf32> to vector<1x16x1xf32>
      %cst_157 = arith.constant dense<0xFF800000> : vector<16x1xf32>
      %580 = vector.multi_reduction <maximumf>, %579, %cst_157 [0] : vector<1x16x1xf32> to vector<16x1xf32>
      %581 = vector.shape_cast %580 : vector<16x1xf32> to vector<1x16x1xf32>
      %582 = vector.broadcast %581 : vector<1x16x1xf32> to vector<1x16x128xf32>
      %583 = arith.cmpf oge, %577, %582 : vector<1x16x128xf32>
      %cst_158 = arith.constant -1.000000e+30 : f32
      %584 = vector.broadcast %cst_158 : f32 to vector<1x16x128xf32>
      %585 = arith.select %583, %584, %577 : vector<1x16x128xi1>, vector<1x16x128xf32>
      %cst_159 = arith.constant dense<0xFF800000> : vector<1x16xf32>
      %586 = vector.multi_reduction <maximumf>, %585, %cst_159 [2] : vector<1x16x128xf32> to vector<1x16xf32>
      %587 = vector.shape_cast %586 : vector<1x16xf32> to vector<1x16x1xf32>
      %cst_160 = arith.constant dense<0xFF800000> : vector<16x1xf32>
      %588 = vector.multi_reduction <maximumf>, %587, %cst_160 [0] : vector<1x16x1xf32> to vector<16x1xf32>
      %589 = vector.shape_cast %588 : vector<16x1xf32> to vector<1x16x1xf32>
      %590 = vector.broadcast %589 : vector<1x16x1xf32> to vector<1x16x128xf32>
      %591 = arith.cmpf oge, %585, %590 : vector<1x16x128xf32>
      %cst_161 = arith.constant -1.000000e+30 : f32
      %592 = vector.broadcast %cst_161 : f32 to vector<1x16x128xf32>
      %593 = arith.select %591, %592, %585 : vector<1x16x128xi1>, vector<1x16x128xf32>
      %cst_162 = arith.constant dense<0xFF800000> : vector<1x16xf32>
      %594 = vector.multi_reduction <maximumf>, %593, %cst_162 [2] : vector<1x16x128xf32> to vector<1x16xf32>
      %595 = vector.shape_cast %594 : vector<1x16xf32> to vector<1x16x1xf32>
      %cst_163 = arith.constant dense<0xFF800000> : vector<16x1xf32>
      %596 = vector.multi_reduction <maximumf>, %595, %cst_163 [0] : vector<1x16x1xf32> to vector<16x1xf32>
      %597 = vector.shape_cast %596 : vector<16x1xf32> to vector<1x16x1xf32>
      %598 = vector.broadcast %597 : vector<1x16x1xf32> to vector<1x16x128xf32>
      %599 = arith.cmpf oge, %593, %598 : vector<1x16x128xf32>
      %cst_164 = arith.constant -1.000000e+30 : f32
      %600 = vector.broadcast %cst_164 : f32 to vector<1x16x128xf32>
      %601 = arith.select %599, %600, %593 : vector<1x16x128xi1>, vector<1x16x128xf32>
      %cst_165 = arith.constant dense<0xFF800000> : vector<1x16xf32>
      %602 = vector.multi_reduction <maximumf>, %601, %cst_165 [2] : vector<1x16x128xf32> to vector<1x16xf32>
      %603 = vector.shape_cast %602 : vector<1x16xf32> to vector<1x16x1xf32>
      %cst_166 = arith.constant dense<0xFF800000> : vector<16x1xf32>
      %604 = vector.multi_reduction <maximumf>, %603, %cst_166 [0] : vector<1x16x1xf32> to vector<16x1xf32>
      %605 = vector.shape_cast %604 : vector<16x1xf32> to vector<1x16x1xf32>
      %606 = vector.broadcast %605 : vector<1x16x1xf32> to vector<1x16x128xf32>
      %607 = arith.cmpf oge, %601, %606 : vector<1x16x128xf32>
      %cst_167 = arith.constant -1.000000e+30 : f32
      %608 = vector.broadcast %cst_167 : f32 to vector<1x16x128xf32>
      %609 = arith.select %607, %608, %601 : vector<1x16x128xi1>, vector<1x16x128xf32>
      %cst_168 = arith.constant dense<0xFF800000> : vector<1x16xf32>
      %610 = vector.multi_reduction <maximumf>, %609, %cst_168 [2] : vector<1x16x128xf32> to vector<1x16xf32>
      %611 = vector.shape_cast %610 : vector<1x16xf32> to vector<1x16x1xf32>
      %cst_169 = arith.constant dense<0xFF800000> : vector<16x1xf32>
      %612 = vector.multi_reduction <maximumf>, %611, %cst_169 [0] : vector<1x16x1xf32> to vector<16x1xf32>
      %613 = vector.shape_cast %612 : vector<16x1xf32> to vector<1x16x1xf32>
      %614 = vector.broadcast %613 : vector<1x16x1xf32> to vector<1x16x128xf32>
      %615 = arith.cmpf oge, %609, %614 : vector<1x16x128xf32>
      %cst_170 = arith.constant -1.000000e+30 : f32
      %616 = vector.broadcast %cst_170 : f32 to vector<1x16x128xf32>
      %617 = arith.select %615, %616, %609 : vector<1x16x128xi1>, vector<1x16x128xf32>
      %cst_171 = arith.constant dense<0xFF800000> : vector<1x16xf32>
      %618 = vector.multi_reduction <maximumf>, %617, %cst_171 [2] : vector<1x16x128xf32> to vector<1x16xf32>
      %619 = vector.shape_cast %618 : vector<1x16xf32> to vector<1x16x1xf32>
      %cst_172 = arith.constant dense<0xFF800000> : vector<16x1xf32>
      %620 = vector.multi_reduction <maximumf>, %619, %cst_172 [0] : vector<1x16x1xf32> to vector<16x1xf32>
      %621 = vector.shape_cast %620 : vector<16x1xf32> to vector<1x16x1xf32>
      %622 = vector.shape_cast %621 : vector<1x16x1xf32> to vector<16x1xf32>
      %c0_173 = arith.constant 0 : index
      %c0_174 = arith.constant 0 : index
      %c0_175 = arith.constant 0 : index
      %623 = vector.load %arg6[%c0_173, %c0_174, %c0_175] : memref<1x16x128xf32, #tpu.memory_space<vmem>>, vector<1x16x128xf32>
      %624 = vector.shape_cast %623 : vector<1x16x128xf32> to vector<16x128xf32>
      %c0_176 = arith.constant 0 : index
      %c0_177 = arith.constant 0 : index
      %c0_178 = arith.constant 0 : index
      %625 = vector.load %arg4[%c0_176, %c0_177, %c0_178] : memref<1x1x128xf32, #tpu.memory_space<vmem>>, vector<1x1x128xf32>
      %626 = vector.shape_cast %625 : vector<1x1x128xf32> to vector<1x128xf32>
      %627 = vector.broadcast %626 : vector<1x128xf32> to vector<16x128xf32>
      %628 = arith.mulf %624, %627 : vector<16x128xf32>
      %629 = vector.broadcast %622 : vector<16x1xf32> to vector<16x128xf32>
      %630 = arith.cmpf oge, %628, %629 : vector<16x128xf32>
      %c0_179 = arith.constant 0 : index
      %c0_180 = arith.constant 0 : index
      %c0_181 = arith.constant 0 : index
      %631 = vector.load %arg5[%c0_179, %c0_180, %c0_181] : memref<1x1x128xf32, #tpu.memory_space<vmem>>, vector<1x1x128xf32>
      %632 = vector.shape_cast %631 : vector<1x1x128xf32> to vector<1x128xf32>
      %633 = vector.broadcast %632 : vector<1x128xf32> to vector<16x128xf32>
      %634 = arith.addf %624, %633 : vector<16x128xf32>
      %cst_182 = arith.constant 0.000000e+00 : f32
      %635 = vector.broadcast %cst_182 : f32 to vector<16x128xf32>
      %636 = arith.select %630, %634, %635 : vector<16x128xi1>, vector<16x128xf32>
      %c0_183 = arith.constant 0 : index
      %c0_184 = arith.constant 0 : index
      %c0_185 = arith.constant 0 : index
      %637 = vector.load %arg6[%c0_183, %c0_184, %c0_185] : memref<1x16x128xf32, #tpu.memory_space<vmem>>, vector<1x16x128xf32>
      %638 = vector.shape_cast %637 : vector<1x16x128xf32> to vector<16x128xf32>
      %639 = vector.shape_cast %636 : vector<16x128xf32> to vector<1x16x128xf32>
      tpu.vector_store %arg6[%c0_183, %c0_184, %c0_185], %639 {strides = array<i32>} : memref<1x16x128xf32, #tpu.memory_space<vmem>>, vector<1x16x128xf32>,
    } else {
    }
    return
  }
  func.func @transform_0(%arg0: i32, %arg1: i32) -> (i32, i32) {
    %c0_i32 = arith.constant 0 : i32
    %c0_i32_0 = arith.constant 0 : i32
    return %arg0, %c0_i32 : i32, i32
  }
  func.func @transform_1(%arg0: i32, %arg1: i32) -> (i32, i32) {
    %c0_i32 = arith.constant 0 : i32
    %c0_i32_0 = arith.constant 0 : i32
    return %c0_i32, %arg1 : i32, i32
  }
  func.func @transform_2(%arg0: i32, %arg1: i32) -> (i32, i32, i32) {
    %c0_i32 = arith.constant 0 : i32
    %c0_i32_0 = arith.constant 0 : i32
    %c0_i32_1 = arith.constant 0 : i32
    %c0_i32_2 = arith.constant 0 : i32
    return %c0_i32, %c0_i32_0, %c0_i32_1 : i32, i32, i32
  }
  func.func @transform_3(%arg0: i32, %arg1: i32) -> (i32, i32, i32) {
    %c0_i32 = arith.constant 0 : i32
    %c0_i32_0 = arith.constant 0 : i32
    %c0_i32_1 = arith.constant 0 : i32
    %c0_i32_2 = arith.constant 0 : i32
    return %c0_i32, %c0_i32_0, %c0_i32_1 : i32, i32, i32
  }
  func.func @transform_4(%arg0: i32, %arg1: i32) -> (i32, i32, i32) {
    %c0_i32 = arith.constant 0 : i32
    %c0_i32_0 = arith.constant 0 : i32
    %c0_i32_1 = arith.constant 0 : i32
    return %c0_i32, %arg0, %c0_i32_0 : i32, i32, i32
  }
}

</mosaic_0001>

<llo_original>
// kernel: tpu_custom_call.1
$region0: #{tpu_custom_call.1}
  #allocation0 [shape = 'u32[]', space=smem, size = 0x4, offset = 0x4, fixed_abs, tag = 'smem constant byte address 0x4 - core index']
  #allocation1 [shape = 'u32[144,128]{1,0:T(1,128)}', space=vmem, size = 0x12000, scoped, tag = 'internal scratch']
  #allocation2 [shape = 'f32[1,16,128]{2,1,0:T(8,128)}', space=vmem, size = 0x2000, scoped, tag = 'scratch operand']
  %s0 = inlined_call_operand.hbm [shape: f32[16,64], index: 0, kind: input, shape index: {}]
  %s1 = inlined_call_operand.hbm [shape: f32[64,128], index: 1, kind: input, shape index: {}]
  %s2 = inlined_call_operand.vmem [shape: f32[1,1,128], index: 2, kind: input, shape index: {}]
  %s3 = inlined_call_operand.vmem [shape: f32[1,1,128], index: 3, kind: input, shape index: {}]
  %s4 = inlined_call_operand.hbm [shape: f32[1,16,128], index: 4, kind: output, shape index: {}]
  %s5 = sld [smem:[#allocation0]]
  $region38: #{tpu_custom_call.1} parent=0
    _
  %s7 = ssub.s32 1, %s5
  %s8 = scalar_select 0, %s7, %s5
  $region1: #{tpu_custom_call.1} parent=0
    #allocation3 [shape = 'u8[8192]{0}', space=vmem, size = 0x2000, scoped, tag = 'input window, operand 0, single buffered']
    #allocation4 [shape = 's32[1]{0}', space=sflag, size = 0x4, scoped, tag = 'scoped memory for tpu_custom_call.1']
    #allocation5 [shape = 's32[1]{0}', space=sflag, size = 0x4, scoped, tag = 'scoped memory for tpu_custom_call.1']
    #allocation6 [shape = 'u8[32768]{0}', space=vmem, size = 0x8000, scoped, tag = 'input window, operand 1, single buffered']
    #allocation7 [shape = 's32[1]{0}', space=sflag, size = 0x4, scoped, tag = 'scoped memory for tpu_custom_call.1']
    #allocation8 [shape = 'u8[8192]{0}', space=vmem, size = 0x2000, scoped, tag = 'output window, operand 0, single buffered']
    %9 = vsyncpa [#allocation4], 0
    %10 = vsyncpa [#allocation7], 0
    %11 = vsyncpa [#allocation5], 0
    // Predicated region
    $region2: #{tpu_custom_call.1} parent=1 // pred_check
      _
    $region3: #{tpu_custom_call.1} parent=1 // pred_check_branch
      %13 = sbr.rel (0) target = $region5
    $region4: #{tpu_custom_call.1} parent=1 // pred_region
      %s15 = ssub.s32 256, 256
      %16 = vsyncadd [#allocation4], %s15
      %s17 = sshll.u32 [#allocation3], 4
      %s18 = int_to_ptr.vmem [resolvable:$true] %s17
      %23 = dma.hbm_to_vmem [thread:$0]  %s0, 256, %s18, [#allocation4], 128, 128, 8
    $region5: #{tpu_custom_call.1} parent=1 // pred_fallthru
      _
    // Predicated region
    $region6: #{tpu_custom_call.1} parent=1 // pred_check
      _
    $region7: #{tpu_custom_call.1} parent=1 // pred_check_branch
      %25 = sbr.rel (0) target = $region9
    $region8: #{tpu_custom_call.1} parent=1 // pred_region
      %s27 = ssub.s32 1024, 1024
      %28 = vsyncadd [#allocation7], %s27
      %s29 = sshll.u32 [#allocation6], 4
      %s30 = int_to_ptr.vmem [resolvable:$true] %s29
      %35 = dma.hbm_to_vmem [thread:$0]  %s1, 1024, %s30, [#allocation7], 128, 128, 8
    $region9: #{tpu_custom_call.1} parent=1 // pred_fallthru
      _
    // Predicated region
    $region10: #{tpu_custom_call.1} parent=1 // pred_check
      _
    $region11: #{tpu_custom_call.1} parent=1 // pred_check_branch
      %37 = sbr.rel (0) target = $region13
    $region12: #{tpu_custom_call.1} parent=1 // pred_region
      _
    $region13: #{tpu_custom_call.1} parent=1 // pred_fallthru
      _
    // Predicated region
    $region14: #{tpu_custom_call.1} parent=1 // pred_check
      _
    $region15: #{tpu_custom_call.1} parent=1 // pred_check_branch
      %39 = sbr.rel (0) target = $region17
    $region16: #{tpu_custom_call.1} parent=1 // pred_region
      _
    $region17: #{tpu_custom_call.1} parent=1 // pred_fallthru
      _
    // Predicated region
    $region18: #{tpu_custom_call.1} parent=1 // pred_check
      _
    $region19: #{tpu_custom_call.1} parent=1 // pred_check_branch
      %41 = sbr.rel (0) target = $region21
    $region20: #{tpu_custom_call.1} parent=1 // pred_region
      %42 = dma.done [#allocation4], 256
    $region21: #{tpu_custom_call.1} parent=1 // pred_fallthru
      _
    // Predicated region
    $region22: #{tpu_custom_call.1} parent=1 // pred_check
      _
    $region23: #{tpu_custom_call.1} parent=1 // pred_check_branch
      %44 = sbr.rel (0) target = $region25
    $region24: #{tpu_custom_call.1} parent=1 // pred_region
      %45 = dma.done [#allocation7], 1024
    $region25: #{tpu_custom_call.1} parent=1 // pred_fallthru
      _
    %v46 = vld [vmem:[#allocation3] sm:$0xff]
    %v47 = vld [vmem:[#allocation3 + $0x8] sm:$0xff]
    %v48 = vld [vmem:[#allocation6] sm:$0xff]
    %v49 = vld [vmem:[#allocation6 + $0x8] sm:$0xff]
    %v50 = vld [vmem:[#allocation6 + $0x10] sm:$0xff]
    %v51 = vld [vmem:[#allocation6 + $0x18] sm:$0xff]
    %v52 = vld [vmem:[#allocation6 + $0x20] sm:$0xff]
    %v53 = vld [vmem:[#allocation6 + $0x28] sm:$0xff]
    %v54 = vld [vmem:[#allocation6 + $0x30] sm:$0xff]
    %v55 = vld [vmem:[#allocation6 + $0x38] sm:$0xff]
    %vm56 = vcmask 523264
    %v58 = vsel %vm56, %v46, 0
    %v61 = vsel %vm56, %v47, 0
    %63 = vmatprep.subr.mxu0 0.0
    %64 = vmatpush1.msra.mxu0 %v48
    %65 = vmatprep.subr.mxu0 0.0
    %66 = vmatpush1.msra.mxu0 %v49
    %67 = vmatprep.subr.mxu0 0.0
    %68 = vmatpush1.msra.mxu0 %v50
    %69 = vmatprep.subr.mxu0 0.0
    %70 = vmatpush1.msra.mxu0 %v51
    %71 = vmatprep.subr.mxu0 0.0
    %72 = vmatpush1.msra.mxu0 %v52
    %73 = vmatprep.subr.mxu0 0.0
    %74 = vmatpush1.msra.mxu0 %v53
    %75 = vmatprep.subr.mxu0 0.0
    %76 = vmatpush1.msra.mxu0 %v54
    %77 = vmatprep.subr.mxu0 0.0
    %78 = vmatpush1.msra.mxu0 %v55
    %79 = vmatprep.subr.mxu0 0.0
    %80 = vmatpush1.msra.mxu0 0.0
    %81 = vmatprep.subr.mxu0 0.0
    %82 = vmatpush1.msra.mxu0 0.0
    %83 = vmatprep.subr.mxu0 0.0
    %84 = vmatpush1.msra.mxu0 0.0
    %85 = vmatprep.subr.mxu0 0.0
    %86 = vmatpush1.msra.mxu0 0.0
    %87 = vmatprep.subr.mxu0 0.0
    %88 = vmatpush1.msra.mxu0 0.0
    %89 = vmatprep.subr.mxu0 0.0
    %90 = vmatpush1.msra.mxu0 0.0
    %91 = vmatprep.subr.mxu0 0.0
    %92 = vmatpush1.msra.mxu0 0.0
    %93 = vmatprep.subr.mxu0 0.0
    %94 = vmatpush1.msra.mxu0 0.0
    %95 = vmatprep.subr.mxu0 0.0
    %96 = vmatpush1.msra.mxu0 0.0
    %97 = vmatprep.subr.mxu0 0.0
    %98 = vmatpush1.msra.mxu0 0.0
    %99 = vmatprep.subr.mxu0 0.0
    %100 = vmatpush1.msra.mxu0 0.0
    %101 = vmatprep.subr.mxu0 0.0
    %102 = vmatpush1.msra.mxu0 0.0
    %103 = vmatprep.subr.mxu0 0.0
    %104 = vmatpush1.msra.mxu0 0.0
    %105 = vmatprep.subr.mxu0 0.0
    %106 = vmatpush1.msra.mxu0 0.0
    %107 = vmatprep.subr.mxu0 0.0
    %108 = vmatpush1.msra.mxu0 0.0
    %109 = vmatprep.subr.mxu0 0.0
    %110 = vmatpush1.msra.mxu0 0.0
    %111 = vmatprep.subr.mxu0 0.0
    %112 = vmatpush1.msra.mxu0 0.0
    %113 = vmatprep.subr.mxu0 0.0
    %114 = vmatpush1.msra.mxu0 0.0
    %115 = vmatprep.subr.mxu0 0.0
    %116 = vmatpush1.msra.mxu0 0.0
    %117 = vmatprep.subr.mxu0 0.0
    %118 = vmatpush1.msra.mxu0 0.0
    %119 = vmatprep.subr.mxu0 0.0
    %120 = vmatpush1.msra.mxu0 0.0
    %121 = vmatprep.subr.mxu0 0.0
    %122 = vmatpush1.msra.mxu0 0.0
    %123 = vmatprep.subr.mxu0 0.0
    %124 = vmatpush1.msra.mxu0 0.0
    %125 = vmatprep.subr.mxu0 0.0
    %126 = vmatpush1.msra.mxu0 0.0
    %127 = vmatprep.mubr.f32.mxu0 0.0
    %128 = vmatmul.mubr.f32.gmra.mrb[0].mxu0 %v58
    %v129 = vpop.f32.mrb[0].mxu0
    %v130 = vadd.f32 0.0, %v129
    %v131 = vpop.f32.mrb[0].mxu0
    %132 = vmatprep.mubr.f32.mxu0 0.0
    %133 = vmatmul.mubr.f32.gmra.mrb[0].mxu0 %v61
    %v134 = vpop.f32.mrb[0].mxu0
    %v135 = vadd.f32 0.0, %v134
    %v136 = vpop.f32.mrb[0].mxu0
    %137 = vdwg.mxu0
    %s138 = smul.u32 0, 16
    %s139 = scalar_lea.vmem [#allocation8], %s138
    %140 = vst [vmem:[%s139] sm:$0xff] %v130
    %141 = vst [vmem:[%s139 + $0x8] sm:$0xff] %v135
    %v142 = vld [vmem:[%s2] sm:$0x1]
    %v144 = vlaneseq
    %v145 = vshrl.u32 %v144, 7
    %v146 = vsub.s32 0, %v145
    %v147 = vrot.slane %v142, %v146
    %v149 = vmul.f32 %v130, %v147
    %v150 = vmul.f32 %v135, %v147
    %v151 = vlaneseq
    %v152 = vand.u32 %v151, 127
    %153 = vmax.xlane.f32.xlu0 %v149
    %v154 = vpop.xlane.xlu0 %153
    %155 = vmax.xlane.f32.xlu0 %v150
    %v156 = vpop.xlane.xlu0 %155
    %vm157 = vcmp.eq.s32.totalorder %v152, 0
    %v158 = vsel %vm157, %v154, -1e+30
    %v159 = vsel %vm157, %v156, -1e+30
    %vm160 = vcmp.ge.f32.partialorder %v149, %v154
    %vm161 = vcmp.ge.f32.partialorder %v150, %v156
    %v162 = vsel %vm160, -1e+30, %v149
    %v163 = vsel %vm161, -1e+30, %v150
    %164 = vmax.xlane.f32.xlu0 %v162
    %v165 = vpop.xlane.xlu0 %164
    %166 = vmax.xlane.f32.xlu0 %v163
    %v167 = vpop.xlane.xlu0 %166
    %vm168 = vcmp.eq.s32.totalorder %v152, 1
    %v169 = vsel %vm168, %v165, %v158
    %v170 = vsel %vm168, %v167, %v159
    %vm171 = vcmp.ge.f32.partialorder %v162, %v165
    %vm172 = vcmp.ge.f32.partialorder %v163, %v167
    %v173 = vsel %vm171, -1e+30, %v162
    %v174 = vsel %vm172, -1e+30, %v163
    %175 = vmax.xlane.f32.xlu0 %v173
    %v176 = vpop.xlane.xlu0 %175
    %177 = vmax.xlane.f32.xlu0 %v174
    %v178 = vpop.xlane.xlu0 %177
    %vm179 = vcmp.eq.s32.totalorder %v152, 2
    %v180 = vsel %vm179, %v176, %v169
    %v181 = vsel %vm179, %v178, %v170
    %vm182 = vcmp.ge.f32.partialorder %v173, %v176
    %vm183 = vcmp.ge.f32.partialorder %v174, %v178
    %v184 = vsel %vm182, -1e+30, %v173
    %v185 = vsel %vm183, -1e+30, %v174
    %186 = vmax.xlane.f32.xlu0 %v184
    %v187 = vpop.xlane.xlu0 %186
    %188 = vmax.xlane.f32.xlu0 %v185
    %v189 = vpop.xlane.xlu0 %188
    %vm190 = vcmp.eq.s32.totalorder %v152, 3
    %v191 = vsel %vm190, %v187, %v180
    %v192 = vsel %vm190, %v189, %v181
    %vm193 = vcmp.ge.f32.partialorder %v184, %v187
    %vm194 = vcmp.ge.f32.partialorder %v185, %v189
    %v195 = vsel %vm193, -1e+30, %v184
    %v196 = vsel %vm194, -1e+30, %v185
    %197 = vmax.xlane.f32.xlu0 %v195
    %v198 = vpop.xlane.xlu0 %197
    %199 = vmax.xlane.f32.xlu0 %v196
    %v200 = vpop.xlane.xlu0 %199
    %vm201 = vcmp.eq.s32.totalorder %v152, 4
    %v202 = vsel %vm201, %v198, %v191
    %v203 = vsel %vm201, %v200, %v192
    %vm204 = vcmp.ge.f32.partialorder %v195, %v198
    %vm205 = vcmp.ge.f32.partialorder %v196, %v200
    %v206 = vsel %vm204, -1e+30, %v195
    %v207 = vsel %vm205, -1e+30, %v196
    %208 = vmax.xlane.f32.xlu0 %v206
    %v209 = vpop.xlane.xlu0 %208
    %210 = vmax.xlane.f32.xlu0 %v207
    %v211 = vpop.xlane.xlu0 %210
    %vm212 = vcmp.eq.s32.totalorder %v152, 5
    %v213 = vsel %vm212, %v209, %v202
    %v214 = vsel %vm212, %v211, %v203
    %vm215 = vcmp.ge.f32.partialorder %v206, %v209
    %vm216 = vcmp.ge.f32.partialorder %v207, %v211
    %v217 = vsel %vm215, -1e+30, %v206
    %v218 = vsel %vm216, -1e+30, %v207
    %219 = vmax.xlane.f32.xlu0 %v217
    %v220 = vpop.xlane.xlu0 %219
    %221 = vmax.xlane.f32.xlu0 %v218
    %v222 = vpop.xlane.xlu0 %221
    %vm223 = vcmp.eq.s32.totalorder %v152, 6
    %v224 = vsel %vm223, %v220, %v213
    %v225 = vsel %vm223, %v222, %v214
    %vm226 = vcmp.ge.f32.partialorder %v217, %v220
    %vm227 = vcmp.ge.f32.partialorder %v218, %v222
    %v228 = vsel %vm226, -1e+30, %v217
    %v229 = vsel %vm227, -1e+30, %v218
    %230 = vmax.xlane.f32.xlu0 %v228
    %v231 = vpop.xlane.xlu0 %230
    %232 = vmax.xlane.f32.xlu0 %v229
    %v233 = vpop.xlane.xlu0 %232
    %vm234 = vcmp.eq.s32.totalorder %v152, 7
    %v235 = vsel %vm234, %v231, %v224
    %v236 = vsel %vm234, %v233, %v225
    %vm237 = vcmp.ge.f32.partialorder %v228, %v231
    %vm238 = vcmp.ge.f32.partialorder %v229, %v233
    %v239 = vsel %vm237, -1e+30, %v228
    %v240 = vsel %vm238, -1e+30, %v229
    %241 = vmax.xlane.f32.xlu0 %v239
    %v242 = vpop.xlane.xlu0 %241
    %243 = vmax.xlane.f32.xlu0 %v240
    %v244 = vpop.xlane.xlu0 %243
    %vm245 = vcmp.eq.s32.totalorder %v152, 8
    %v246 = vsel %vm245, %v242, %v235
    %v247 = vsel %vm245, %v244, %v236
    %vm248 = vcmp.ge.f32.partialorder %v239, %v242
    %vm249 = vcmp.ge.f32.partialorder %v240, %v244
    %v250 = vsel %vm248, -1e+30, %v239
    %v251 = vsel %vm249, -1e+30, %v240
    %252 = vmax.xlane.f32.xlu0 %v250
    %v253 = vpop.xlane.xlu0 %252
    %254 = vmax.xlane.f32.xlu0 %v251
    %v255 = vpop.xlane.xlu0 %254
    %vm256 = vcmp.eq.s32.totalorder %v152, 9
    %v257 = vsel %vm256, %v253, %v246
    %v258 = vsel %vm256, %v255, %v247
    %vm259 = vcmp.ge.f32.partialorder %v250, %v253
    %vm260 = vcmp.ge.f32.partialorder %v251, %v255
    %v261 = vsel %vm259, -1e+30, %v250
    %v262 = vsel %vm260, -1e+30, %v251
    %263 = vmax.xlane.f32.xlu0 %v261
    %v264 = vpop.xlane.xlu0 %263
    %265 = vmax.xlane.f32.xlu0 %v262
    %v266 = vpop.xlane.xlu0 %265
    %vm267 = vcmp.eq.s32.totalorder %v152, 10
    %v268 = vsel %vm267, %v264, %v257
    %v269 = vsel %vm267, %v266, %v258
    %vm270 = vcmp.ge.f32.partialorder %v261, %v264
    %vm271 = vcmp.ge.f32.partialorder %v262, %v266
    %v272 = vsel %vm270, -1e+30, %v261
    %v273 = vsel %vm271, -1e+30, %v262
    %274 = vmax.xlane.f32.xlu0 %v272
    %v275 = vpop.xlane.xlu0 %274
    %276 = vmax.xlane.f32.xlu0 %v273
    %v277 = vpop.xlane.xlu0 %276
    %vm278 = vcmp.eq.s32.totalorder %v152, 11
    %v279 = vsel %vm278, %v275, %v268
    %v280 = vsel %vm278, %v277, %v269
    %vm281 = vcmp.ge.f32.partialorder %v272, %v275
    %vm282 = vcmp.ge.f32.partialorder %v273, %v277
    %v283 = vsel %vm281, -1e+30, %v272
    %v284 = vsel %vm282, -1e+30, %v273
    %285 = vmax.xlane.f32.xlu0 %v283
    %v286 = vpop.xlane.xlu0 %285
    %287 = vmax.xlane.f32.xlu0 %v284
    %v288 = vpop.xlane.xlu0 %287
    %vm289 = vcmp.eq.s32.totalorder %v152, 12
    %v290 = vsel %vm289, %v286, %v279
    %v291 = vsel %vm289, %v288, %v280
    %vm292 = vcmp.ge.f32.partialorder %v283, %v286
    %vm293 = vcmp.ge.f32.partialorder %v284, %v288
    %v294 = vsel %vm292, -1e+30, %v283
    %v295 = vsel %vm293, -1e+30, %v284
    %296 = vmax.xlane.f32.xlu0 %v294
    %v297 = vpop.xlane.xlu0 %296
    %298 = vmax.xlane.f32.xlu0 %v295
    %v299 = vpop.xlane.xlu0 %298
    %vm300 = vcmp.eq.s32.totalorder %v152, 13
    %v301 = vsel %vm300, %v297, %v290
    %v302 = vsel %vm300, %v299, %v291
    %vm303 = vcmp.ge.f32.partialorder %v294, %v297
    %vm304 = vcmp.ge.f32.partialorder %v295, %v299
    %v305 = vsel %vm303, -1e+30, %v294
    %v306 = vsel %vm304, -1e+30, %v295
    %307 = vmax.xlane.f32.xlu0 %v305
    %v308 = vpop.xlane.xlu0 %307
    %309 = vmax.xlane.f32.xlu0 %v306
    %v310 = vpop.xlane.xlu0 %309
    %vm311 = vcmp.eq.s32.totalorder %v152, 14
    %v312 = vsel %vm311, %v308, %v301
    %v313 = vsel %vm311, %v310, %v302
    %vm314 = vcmp.ge.f32.partialorder %v305, %v308
    %vm315 = vcmp.ge.f32.partialorder %v306, %v310
    %v316 = vsel %vm314, -1e+30, %v305
    %v317 = vsel %vm315, -1e+30, %v306
    %318 = vmax.xlane.f32.xlu0 %v316
    %v319 = vpop.xlane.xlu0 %318
    %320 = vmax.xlane.f32.xlu0 %v317
    %v321 = vpop.xlane.xlu0 %320
    %vm322 = vcmp.eq.s32.totalorder %v152, 15
    %v323 = vsel %vm322, %v319, %v312
    %v324 = vsel %vm322, %v321, %v313
    %vm325 = vcmp.ge.f32.partialorder %v316, %v319
    %vm326 = vcmp.ge.f32.partialorder %v317, %v321
    %v327 = vsel %vm325, -1e+30, %v316
    %v328 = vsel %vm326, -1e+30, %v317
    %329 = vmax.xlane.f32.xlu0 %v327
    %v330 = vpop.xlane.xlu0 %329
    %331 = vmax.xlane.f32.xlu0 %v328
    %v332 = vpop.xlane.xlu0 %331
    %vm333 = vcmp.eq.s32.totalorder %v152, 16
    %v334 = vsel %vm333, %v330, %v323
    %v335 = vsel %vm333, %v332, %v324
    %vm336 = vcmp.ge.f32.partialorder %v327, %v330
    %vm337 = vcmp.ge.f32.partialorder %v328, %v332
    %v338 = vsel %vm336, -1e+30, %v327
    %v339 = vsel %vm337, -1e+30, %v328
    %340 = vmax.xlane.f32.xlu0 %v338
    %v341 = vpop.xlane.xlu0 %340
    %342 = vmax.xlane.f32.xlu0 %v339
    %v343 = vpop.xlane.xlu0 %342
    %vm344 = vcmp.eq.s32.totalorder %v152, 17
    %v345 = vsel %vm344, %v341, %v334
    %v346 = vsel %vm344, %v343, %v335
    %vm347 = vcmp.ge.f32.partialorder %v338, %v341
    %vm348 = vcmp.ge.f32.partialorder %v339, %v343
    %v349 = vsel %vm347, -1e+30, %v338
    %v350 = vsel %vm348, -1e+30, %v339
    %351 = vmax.xlane.f32.xlu0 %v349
    %v352 = vpop.xlane.xlu0 %351
    %353 = vmax.xlane.f32.xlu0 %v350
    %v354 = vpop.xlane.xlu0 %353
    %vm355 = vcmp.eq.s32.totalorder %v152, 18
    %v356 = vsel %vm355, %v352, %v345
    %v357 = vsel %vm355, %v354, %v346
    %vm358 = vcmp.ge.f32.partialorder %v349, %v352
    %vm359 = vcmp.ge.f32.partialorder %v350, %v354
    %v360 = vsel %vm358, -1e+30, %v349
    %v361 = vsel %vm359, -1e+30, %v350
    %362 = vmax.xlane.f32.xlu0 %v360
    %v363 = vpop.xlane.xlu0 %362
    %364 = vmax.xlane.f32.xlu0 %v361
    %v365 = vpop.xlane.xlu0 %364
    %vm366 = vcmp.eq.s32.totalorder %v152, 19
    %v367 = vsel %vm366, %v363, %v356
    %v368 = vsel %vm366, %v365, %v357
    %vm369 = vcmp.ge.f32.partialorder %v360, %v363
    %vm370 = vcmp.ge.f32.partialorder %v361, %v365
    %v371 = vsel %vm369, -1e+30, %v360
    %v372 = vsel %vm370, -1e+30, %v361
    %373 = vmax.xlane.f32.xlu0 %v371
    %v374 = vpop.xlane.xlu0 %373
    %375 = vmax.xlane.f32.xlu0 %v372
    %v376 = vpop.xlane.xlu0 %375
    %vm377 = vcmp.eq.s32.totalorder %v152, 20
    %v378 = vsel %vm377, %v374, %v367
    %v379 = vsel %vm377, %v376, %v368
    %vm380 = vcmp.ge.f32.partialorder %v371, %v374
    %vm381 = vcmp.ge.f32.partialorder %v372, %v376
    %v382 = vsel %vm380, -1e+30, %v371
    %v383 = vsel %vm381, -1e+30, %v372
    %384 = vmax.xlane.f32.xlu0 %v382
    %v385 = vpop.xlane.xlu0 %384
    %386 = vmax.xlane.f32.xlu0 %v383
    %v387 = vpop.xlane.xlu0 %386
    %vm388 = vcmp.eq.s32.totalorder %v152, 21
    %v389 = vsel %vm388, %v385, %v378
    %v390 = vsel %vm388, %v387, %v379
    %vm391 = vcmp.ge.f32.partialorder %v382, %v385
    %vm392 = vcmp.ge.f32.partialorder %v383, %v387
    %v393 = vsel %vm391, -1e+30, %v382
    %v394 = vsel %vm392, -1e+30, %v383
    %395 = vmax.xlane.f32.xlu0 %v393
    %v396 = vpop.xlane.xlu0 %395
    %397 = vmax.xlane.f32.xlu0 %v394
    %v398 = vpop.xlane.xlu0 %397
    %vm399 = vcmp.eq.s32.totalorder %v152, 22
    %v400 = vsel %vm399, %v396, %v389
    %v401 = vsel %vm399, %v398, %v390
    %vm402 = vcmp.ge.f32.partialorder %v393, %v396
    %vm403 = vcmp.ge.f32.partialorder %v394, %v398
    %v404 = vsel %vm402, -1e+30, %v393
    %v405 = vsel %vm403, -1e+30, %v394
    %406 = vmax.xlane.f32.xlu0 %v404
    %v407 = vpop.xlane.xlu0 %406
    %408 = vmax.xlane.f32.xlu0 %v405
    %v409 = vpop.xlane.xlu0 %408
    %vm410 = vcmp.eq.s32.totalorder %v152, 23
    %v411 = vsel %vm410, %v407, %v400
    %v412 = vsel %vm410, %v409, %v401
    %vm413 = vcmp.ge.f32.partialorder %v404, %v407
    %vm414 = vcmp.ge.f32.partialorder %v405, %v409
    %v415 = vsel %vm413, -1e+30, %v404
    %v416 = vsel %vm414, -1e+30, %v405
    %417 = vmax.xlane.f32.xlu0 %v415
    %v418 = vpop.xlane.xlu0 %417
    %419 = vmax.xlane.f32.xlu0 %v416
    %v420 = vpop.xlane.xlu0 %419
    %vm421 = vcmp.eq.s32.totalorder %v152, 24
    %v422 = vsel %vm421, %v418, %v411
    %v423 = vsel %vm421, %v420, %v412
    %vm424 = vcmp.ge.f32.partialorder %v415, %v418
    %vm425 = vcmp.ge.f32.partialorder %v416, %v420
    %v426 = vsel %vm424, -1e+30, %v415
    %v427 = vsel %vm425, -1e+30, %v416
    %428 = vmax.xlane.f32.xlu0 %v426
    %v429 = vpop.xlane.xlu0 %428
    %430 = vmax.xlane.f32.xlu0 %v427
    %v431 = vpop.xlane.xlu0 %430
    %vm432 = vcmp.eq.s32.totalorder %v152, 25
    %v433 = vsel %vm432, %v429, %v422
    %v434 = vsel %vm432, %v431, %v423
    %vm435 = vcmp.ge.f32.partialorder %v426, %v429
    %vm436 = vcmp.ge.f32.partialorder %v427, %v431
    %v437 = vsel %vm435, -1e+30, %v426
    %v438 = vsel %vm436, -1e+30, %v427
    %439 = vmax.xlane.f32.xlu0 %v437
    %v440 = vpop.xlane.xlu0 %439
    %441 = vmax.xlane.f32.xlu0 %v438
    %v442 = vpop.xlane.xlu0 %441
    %vm443 = vcmp.eq.s32.totalorder %v152, 26
    %v444 = vsel %vm443, %v440, %v433
    %v445 = vsel %vm443, %v442, %v434
    %vm446 = vcmp.ge.f32.partialorder %v437, %v440
    %vm447 = vcmp.ge.f32.partialorder %v438, %v442
    %v448 = vsel %vm446, -1e+30, %v437
    %v449 = vsel %vm447, -1e+30, %v438
    %450 = vmax.xlane.f32.xlu0 %v448
    %v451 = vpop.xlane.xlu0 %450
    %452 = vmax.xlane.f32.xlu0 %v449
    %v453 = vpop.xlane.xlu0 %452
    %vm454 = vcmp.eq.s32.totalorder %v152, 27
    %v455 = vsel %vm454, %v451, %v444
    %v456 = vsel %vm454, %v453, %v445
    %vm457 = vcmp.ge.f32.partialorder %v448, %v451
    %vm458 = vcmp.ge.f32.partialorder %v449, %v453
    %v459 = vsel %vm457, -1e+30, %v448
    %v460 = vsel %vm458, -1e+30, %v449
    %461 = vmax.xlane.f32.xlu0 %v459
    %v462 = vpop.xlane.xlu0 %461
    %463 = vmax.xlane.f32.xlu0 %v460
    %v464 = vpop.xlane.xlu0 %463
    %vm465 = vcmp.eq.s32.totalorder %v152, 28
    %v466 = vsel %vm465, %v462, %v455
    %v467 = vsel %vm465, %v464, %v456
    %vm468 = vcmp.ge.f32.partialorder %v459, %v462
    %vm469 = vcmp.ge.f32.partialorder %v460, %v464
    %v470 = vsel %vm468, -1e+30, %v459
    %v471 = vsel %vm469, -1e+30, %v460
    %472 = vmax.xlane.f32.xlu0 %v470
    %v473 = vpop.xlane.xlu0 %472
    %474 = vmax.xlane.f32.xlu0 %v471
    %v475 = vpop.xlane.xlu0 %474
    %vm476 = vcmp.eq.s32.totalorder %v152, 29
    %v477 = vsel %vm476, %v473, %v466
    %v478 = vsel %vm476, %v475, %v467
    %vm479 = vcmp.ge.f32.partialorder %v470, %v473
    %vm480 = vcmp.ge.f32.partialorder %v471, %v475
    %v481 = vsel %vm479, -1e+30, %v470
    %v482 = vsel %vm480, -1e+30, %v471
    %483 = vmax.xlane.f32.xlu0 %v481
    %v484 = vpop.xlane.xlu0 %483
    %485 = vmax.xlane.f32.xlu0 %v482
    %v486 = vpop.xlane.xlu0 %485
    %vm487 = vcmp.eq.s32.totalorder %v152, 30
    %v488 = vsel %vm487, %v484, %v477
    %v489 = vsel %vm487, %v486, %v478
    %vm490 = vcmp.ge.f32.partialorder %v481, %v484
    %vm491 = vcmp.ge.f32.partialorder %v482, %v486
    %v492 = vsel %vm490, -1e+30, %v481
    %v493 = vsel %vm491, -1e+30, %v482
    %494 = vmax.xlane.f32.xlu0 %v492
    %v495 = vpop.xlane.xlu0 %494
    %496 = vmax.xlane.f32.xlu0 %v493
    %v497 = vpop.xlane.xlu0 %496
    %vm498 = vcmp.eq.s32.totalorder %v152, 31
    %v499 = vsel %vm498, %v495, %v488
    %v500 = vsel %vm498, %v497, %v489
    %s501 = scalar_lea.vmem [#allocation2], %s138
    %502 = vst [vmem:[%s501] sm:$0xff] %v499
    %503 = vst [vmem:[%s501 + $0x8] sm:$0xff] %v500
    %p504 = scmp.eq.s32.totalorder 0, 0
    // Predicated region
    $region26: #{tpu_custom_call.1} parent=1 // pred_check
      %p505 = pneg %p504
    $region27: #{tpu_custom_call.1} parent=1 // pred_check_branch
      %507 = sbr.rel (%p505) target = $region29
    $region28: #{tpu_custom_call.1} parent=1 // pred_region
      %v508 = vld [vmem:[#allocation2] sm:$0xff]
      %v509 = vld [vmem:[#allocation2 + $0x8] sm:$0xff]
      %510 = vmax.xlane.f32.xlu0 %v508
      %v511 = vpop.xlane.xlu0 %510
      %512 = vmax.xlane.f32.xlu0 %v509
      %v513 = vpop.xlane.xlu0 %512
      %vm514 = vcmp.ge.f32.partialorder %v508, %v511
      %vm515 = vcmp.ge.f32.partialorder %v509, %v513
      %v516 = vsel %vm514, -1e+30, %v508
      %v517 = vsel %vm515, -1e+30, %v509
      %518 = vmax.xlane.f32.xlu0 %v516
      %v519 = vpop.xlane.xlu0 %518
      %520 = vmax.xlane.f32.xlu0 %v517
      %v521 = vpop.xlane.xlu0 %520
      %vm522 = vcmp.ge.f32.partialorder %v516, %v519
      %vm523 = vcmp.ge.f32.partialorder %v517, %v521
      %v524 = vsel %vm522, -1e+30, %v516
      %v525 = vsel %vm523, -1e+30, %v517
      %526 = vmax.xlane.f32.xlu0 %v524
      %v527 = vpop.xlane.xlu0 %526
      %528 = vmax.xlane.f32.xlu0 %v525
      %v529 = vpop.xlane.xlu0 %528
      %vm530 = vcmp.ge.f32.partialorder %v524, %v527
      %vm531 = vcmp.ge.f32.partialorder %v525, %v529
      %v532 = vsel %vm530, -1e+30, %v524
      %v533 = vsel %vm531, -1e+30, %v525
      %534 = vmax.xlane.f32.xlu0 %v532
      %v535 = vpop.xlane.xlu0 %534
      %536 = vmax.xlane.f32.xlu0 %v533
      %v537 = vpop.xlane.xlu0 %536
      %vm538 = vcmp.ge.f32.partialorder %v532, %v535
      %vm539 = vcmp.ge.f32.partialorder %v533, %v537
      %v540 = vsel %vm538, -1e+30, %v532
      %v541 = vsel %vm539, -1e+30, %v533
      %542 = vmax.xlane.f32.xlu0 %v540
      %v543 = vpop.xlane.xlu0 %542
      %544 = vmax.xlane.f32.xlu0 %v541
      %v545 = vpop.xlane.xlu0 %544
      %vm546 = vcmp.ge.f32.partialorder %v540, %v543
      %vm547 = vcmp.ge.f32.partialorder %v541, %v545
      %v548 = vsel %vm546, -1e+30, %v540
      %v549 = vsel %vm547, -1e+30, %v541
      %550 = vmax.xlane.f32.xlu0 %v548
      %v551 = vpop.xlane.xlu0 %550
      %552 = vmax.xlane.f32.xlu0 %v549
      %v553 = vpop.xlane.xlu0 %552
      %vm554 = vcmp.ge.f32.partialorder %v548, %v551
      %vm555 = vcmp.ge.f32.partialorder %v549, %v553
      %v556 = vsel %vm554, -1e+30, %v548
      %v557 = vsel %vm555, -1e+30, %v549
      %558 = vmax.xlane.f32.xlu0 %v556
      %v559 = vpop.xlane.xlu0 %558
      %560 = vmax.xlane.f32.xlu0 %v557
      %v561 = vpop.xlane.xlu0 %560
      %vm562 = vcmp.ge.f32.partialorder %v556, %v559
      %vm563 = vcmp.ge.f32.partialorder %v557, %v561
      %v564 = vsel %vm562, -1e+30, %v556
      %v565 = vsel %vm563, -1e+30, %v557
      %566 = vmax.xlane.f32.xlu0 %v564
      %v567 = vpop.xlane.xlu0 %566
      %568 = vmax.xlane.f32.xlu0 %v565
      %v569 = vpop.xlane.xlu0 %568
      %vm570 = vcmp.ge.f32.partialorder %v564, %v567
      %vm571 = vcmp.ge.f32.partialorder %v565, %v569
      %v572 = vsel %vm570, -1e+30, %v564
      %v573 = vsel %vm571, -1e+30, %v565
      %574 = vmax.xlane.f32.xlu0 %v572
      %v575 = vpop.xlane.xlu0 %574
      %576 = vmax.xlane.f32.xlu0 %v573
      %v577 = vpop.xlane.xlu0 %576
      %vm578 = vcmp.ge.f32.partialorder %v572, %v575
      %vm579 = vcmp.ge.f32.partialorder %v573, %v577
      %v580 = vsel %vm578, -1e+30, %v572
      %v581 = vsel %vm579, -1e+30, %v573
      %582 = vmax.xlane.f32.xlu0 %v580
      %v583 = vpop.xlane.xlu0 %582
      %584 = vmax.xlane.f32.xlu0 %v581
      %v585 = vpop.xlane.xlu0 %584
      %vm586 = vcmp.ge.f32.partialorder %v580, %v583
      %vm587 = vcmp.ge.f32.partialorder %v581, %v585
      %v588 = vsel %vm586, -1e+30, %v580
      %v589 = vsel %vm587, -1e+30, %v581
      %590 = vmax.xlane.f32.xlu0 %v588
      %v591 = vpop.xlane.xlu0 %590
      %592 = vmax.xlane.f32.xlu0 %v589
      %v593 = vpop.xlane.xlu0 %592
      %vm594 = vcmp.ge.f32.partialorder %v588, %v591
      %vm595 = vcmp.ge.f32.partialorder %v589, %v593
      %v596 = vsel %vm594, -1e+30, %v588
      %v597 = vsel %vm595, -1e+30, %v589
      %598 = vmax.xlane.f32.xlu0 %v596
      %v599 = vpop.xlane.xlu0 %598
      %600 = vmax.xlane.f32.xlu0 %v597
      %v601 = vpop.xlane.xlu0 %600
      %vm602 = vcmp.ge.f32.partialorder %v596, %v599
      %vm603 = vcmp.ge.f32.partialorder %v597, %v601
      %v604 = vsel %vm602, -1e+30, %v596
      %v605 = vsel %vm603, -1e+30, %v597
      %606 = vmax.xlane.f32.xlu0 %v604
      %v607 = vpop.xlane.xlu0 %606
      %608 = vmax.xlane.f32.xlu0 %v605
      %v609 = vpop.xlane.xlu0 %608
      %vm610 = vcmp.ge.f32.partialorder %v604, %v607
      %vm611 = vcmp.ge.f32.partialorder %v605, %v609
      %v612 = vsel %vm610, -1e+30, %v604
      %v613 = vsel %vm611, -1e+30, %v605
      %614 = vmax.xlane.f32.xlu0 %v612
      %v615 = vpop.xlane.xlu0 %614
      %616 = vmax.xlane.f32.xlu0 %v613
      %v617 = vpop.xlane.xlu0 %616
      %vm618 = vcmp.ge.f32.partialorder %v612, %v615
      %vm619 = vcmp.ge.f32.partialorder %v613, %v617
      %v620 = vsel %vm618, -1e+30, %v612
      %v621 = vsel %vm619, -1e+30, %v613
      %622 = vmax.xlane.f32.xlu0 %v620
      %v623 = vpop.xlane.xlu0 %622
      %624 = vmax.xlane.f32.xlu0 %v621
      %v625 = vpop.xlane.xlu0 %624
      %vm626 = vcmp.ge.f32.partialorder %v620, %v623
      %vm627 = vcmp.ge.f32.partialorder %v621, %v625
      %v628 = vsel %vm626, -1e+30, %v620
      %v629 = vsel %vm627, -1e+30, %v621
      %630 = vmax.xlane.f32.xlu0 %v628
      %v631 = vpop.xlane.xlu0 %630
      %632 = vmax.xlane.f32.xlu0 %v629
      %v633 = vpop.xlane.xlu0 %632
      %vm634 = vcmp.ge.f32.partialorder %v628, %v631
      %vm635 = vcmp.ge.f32.partialorder %v629, %v633
      %v636 = vsel %vm634, -1e+30, %v628
      %v637 = vsel %vm635, -1e+30, %v629
      %638 = vmax.xlane.f32.xlu0 %v636
      %v639 = vpop.xlane.xlu0 %638
      %640 = vmax.xlane.f32.xlu0 %v637
      %v641 = vpop.xlane.xlu0 %640
      %vm642 = vcmp.ge.f32.partialorder %v636, %v639
      %vm643 = vcmp.ge.f32.partialorder %v637, %v641
      %v644 = vsel %vm642, -1e+30, %v636
      %v645 = vsel %vm643, -1e+30, %v637
      %646 = vmax.xlane.f32.xlu0 %v644
      %v647 = vpop.xlane.xlu0 %646
      %648 = vmax.xlane.f32.xlu0 %v645
      %v649 = vpop.xlane.xlu0 %648
      %vm650 = vcmp.ge.f32.partialorder %v644, %v647
      %vm651 = vcmp.ge.f32.partialorder %v645, %v649
      %v652 = vsel %vm650, -1e+30, %v644
      %v653 = vsel %vm651, -1e+30, %v645
      %654 = vmax.xlane.f32.xlu0 %v652
      %v655 = vpop.xlane.xlu0 %654
      %656 = vmax.xlane.f32.xlu0 %v653
      %v657 = vpop.xlane.xlu0 %656
      %vm658 = vcmp.ge.f32.partialorder %v652, %v655
      %vm659 = vcmp.ge.f32.partialorder %v653, %v657
      %v660 = vsel %vm658, -1e+30, %v652
      %v661 = vsel %vm659, -1e+30, %v653
      %662 = vmax.xlane.f32.xlu0 %v660
      %v663 = vpop.xlane.xlu0 %662
      %664 = vmax.xlane.f32.xlu0 %v661
      %v665 = vpop.xlane.xlu0 %664
      %vm666 = vcmp.ge.f32.partialorder %v660, %v663
      %vm667 = vcmp.ge.f32.partialorder %v661, %v665
      %v668 = vsel %vm666, -1e+30, %v660
      %v669 = vsel %vm667, -1e+30, %v661
      %670 = vmax.xlane.f32.xlu0 %v668
      %v671 = vpop.xlane.xlu0 %670
      %672 = vmax.xlane.f32.xlu0 %v669
      %v673 = vpop.xlane.xlu0 %672
      %vm674 = vcmp.ge.f32.partialorder %v668, %v671
      %vm675 = vcmp.ge.f32.partialorder %v669, %v673
      %v676 = vsel %vm674, -1e+30, %v668
      %v677 = vsel %vm675, -1e+30, %v669
      %678 = vmax.xlane.f32.xlu0 %v676
      %v679 = vpop.xlane.xlu0 %678
      %680 = vmax.xlane.f32.xlu0 %v677
      %v681 = vpop.xlane.xlu0 %680
      %vm682 = vcmp.ge.f32.partialorder %v676, %v679
      %vm683 = vcmp.ge.f32.partialorder %v677, %v681
      %v684 = vsel %vm682, -1e+30, %v676
      %v685 = vsel %vm683, -1e+30, %v677
      %686 = vmax.xlane.f32.xlu0 %v684
      %v687 = vpop.xlane.xlu0 %686
      %688 = vmax.xlane.f32.xlu0 %v685
      %v689 = vpop.xlane.xlu0 %688
      %vm690 = vcmp.ge.f32.partialorder %v684, %v687
      %vm691 = vcmp.ge.f32.partialorder %v685, %v689
      %v692 = vsel %vm690, -1e+30, %v684
      %v693 = vsel %vm691, -1e+30, %v685
      %694 = vmax.xlane.f32.xlu0 %v692
      %v695 = vpop.xlane.xlu0 %694
      %696 = vmax.xlane.f32.xlu0 %v693
      %v697 = vpop.xlane.xlu0 %696
      %vm698 = vcmp.ge.f32.partialorder %v692, %v695
      %vm699 = vcmp.ge.f32.partialorder %v693, %v697
      %v700 = vsel %vm698, -1e+30, %v692
      %v701 = vsel %vm699, -1e+30, %v693
      %702 = vmax.xlane.f32.xlu0 %v700
      %v703 = vpop.xlane.xlu0 %702
      %704 = vmax.xlane.f32.xlu0 %v701
      %v705 = vpop.xlane.xlu0 %704
      %vm706 = vcmp.ge.f32.partialorder %v700, %v703
      %vm707 = vcmp.ge.f32.partialorder %v701, %v705
      %v708 = vsel %vm706, -1e+30, %v700
      %v709 = vsel %vm707, -1e+30, %v701
      %710 = vmax.xlane.f32.xlu0 %v708
      %v711 = vpop.xlane.xlu0 %710
      %712 = vmax.xlane.f32.xlu0 %v709
      %v713 = vpop.xlane.xlu0 %712
      %vm714 = vcmp.ge.f32.partialorder %v708, %v711
      %vm715 = vcmp.ge.f32.partialorder %v709, %v713
      %v716 = vsel %vm714, -1e+30, %v708
      %v717 = vsel %vm715, -1e+30, %v709
      %718 = vmax.xlane.f32.xlu0 %v716
      %v719 = vpop.xlane.xlu0 %718
      %720 = vmax.xlane.f32.xlu0 %v717
      %v721 = vpop.xlane.xlu0 %720
      %vm722 = vcmp.ge.f32.partialorder %v716, %v719
      %vm723 = vcmp.ge.f32.partialorder %v717, %v721
      %v724 = vsel %vm722, -1e+30, %v716
      %v725 = vsel %vm723, -1e+30, %v717
      %726 = vmax.xlane.f32.xlu0 %v724
      %v727 = vpop.xlane.xlu0 %726
      %728 = vmax.xlane.f32.xlu0 %v725
      %v729 = vpop.xlane.xlu0 %728
      %vm730 = vcmp.ge.f32.partialorder %v724, %v727
      %vm731 = vcmp.ge.f32.partialorder %v725, %v729
      %v732 = vsel %vm730, -1e+30, %v724
      %v733 = vsel %vm731, -1e+30, %v725
      %734 = vmax.xlane.f32.xlu0 %v732
      %v735 = vpop.xlane.xlu0 %734
      %736 = vmax.xlane.f32.xlu0 %v733
      %v737 = vpop.xlane.xlu0 %736
      %vm738 = vcmp.ge.f32.partialorder %v732, %v735
      %vm739 = vcmp.ge.f32.partialorder %v733, %v737
      %v740 = vsel %vm738, -1e+30, %v732
      %v741 = vsel %vm739, -1e+30, %v733
      %742 = vmax.xlane.f32.xlu0 %v740
      %v743 = vpop.xlane.xlu0 %742
      %744 = vmax.xlane.f32.xlu0 %v741
      %v745 = vpop.xlane.xlu0 %744
      %vm746 = vcmp.ge.f32.partialorder %v740, %v743
      %vm747 = vcmp.ge.f32.partialorder %v741, %v745
      %v748 = vsel %vm746, -1e+30, %v740
      %v749 = vsel %vm747, -1e+30, %v741
      %750 = vmax.xlane.f32.xlu0 %v748
      %v751 = vpop.xlane.xlu0 %750
      %752 = vmax.xlane.f32.xlu0 %v749
      %v753 = vpop.xlane.xlu0 %752
      %vm754 = vcmp.ge.f32.partialorder %v748, %v751
      %vm755 = vcmp.ge.f32.partialorder %v749, %v753
      %v756 = vsel %vm754, -1e+30, %v748
      %v757 = vsel %vm755, -1e+30, %v749
      %758 = vmax.xlane.f32.xlu0 %v756
      %v759 = vpop.xlane.xlu0 %758
      %760 = vmax.xlane.f32.xlu0 %v757
      %v761 = vpop.xlane.xlu0 %760
      %v762 = vld [vmem:[#allocation8] sm:$0xff]
      %v763 = vld [vmem:[#allocation8 + $0x8] sm:$0xff]
      %v764 = vld [vmem:[%s2] sm:$0x1]
      %v766 = vlaneseq
      %v767 = vshrl.u32 %v766, 7
      %v768 = vsub.s32 0, %v767
      %v769 = vrot.slane %v764, %v768
      %v771 = vmul.f32 %v762, %v769
      %v772 = vmul.f32 %v763, %v769
      %vm773 = vcmp.ge.f32.partialorder %v771, %v759
      %vm774 = vcmp.ge.f32.partialorder %v772, %v761
      %v775 = vld [vmem:[%s3] sm:$0x1]
      %v777 = vlaneseq
      %v778 = vshrl.u32 %v777, 7
      %v779 = vsub.s32 0, %v778
      %v780 = vrot.slane %v775, %v779
      %v782 = vadd.f32 %v762, %v780
      %v783 = vadd.f32 %v763, %v780
      %v784 = vsel %vm773, %v782, 0.0
      %v785 = vsel %vm774, %v783, 0.0
      %786 = vst [vmem:[#allocation8] sm:$0xff] %v784
      %787 = vst [vmem:[#allocation8 + $0x8] sm:$0xff] %v785
    $region29: #{tpu_custom_call.1} parent=1 // pred_fallthru
      _
    // Predicated region
    $region30: #{tpu_custom_call.1} parent=1 // pred_check
      _
    $region31: #{tpu_custom_call.1} parent=1 // pred_check_branch
      %789 = sbr.rel (0) target = $region33
    $region32: #{tpu_custom_call.1} parent=1 // pred_region
      %s791 = ssub.s32 256, 256
      %792 = vsyncadd [#allocation5], %s791
      %s793 = sshll.u32 [#allocation8], 4
      %s794 = int_to_ptr.vmem [resolvable:$true] %s793
      %799 = dma.vmem_to_hbm [thread:$0]  %s794, 256, %s4, [#allocation5], 128, 128, 8
    $region33: #{tpu_custom_call.1} parent=1 // pred_fallthru
      _
    // Predicated region
    $region34: #{tpu_custom_call.1} parent=1 // pred_check
      _
    $region35: #{tpu_custom_call.1} parent=1 // pred_check_branch
      %801 = sbr.rel (0) target = $region37
    $region36: #{tpu_custom_call.1} parent=1 // pred_region
      %802 = dma.done [#allocation5], 256
    $region37: #{tpu_custom_call.1} parent=1 // pred_fallthru
      _
    %803 = vsyncpa [#allocation4], 1
    %804 = vsyncpa [#allocation7], 1
    %805 = vsyncpa [#allocation5], 1

</llo_original>
